<compile_context>
chip_gen: v7x
topology: tpu7x:2x2x1
jax: 0.10.0
libtpu: 0.0.40
codegen_flags: <defaults>
</compile_context>

<pallas_src>
import math
import functools

import jax
import jax.numpy as jnp
import numpy as np
from jax.experimental import pallas as pl
from jax.experimental.pallas import tpu as pltpu


def _mha_kernel(x_ref, wqkv_ref, bqkv_ref, wo3_ref, bo_ref, out_ref, *,
                n_head, head_dim, causal_mask, compute_dtype):
    """One grid step == one batch element.

    x_ref   : (1, N, C)   VMEM
    wqkv_ref: (C, 3C)
    bqkv_ref: (1, 3C)
    wo3_ref : (H, hd, C)  -- w_o with its input rows grouped per head
    bo_ref  : (1, C)
    out_ref : (1, N, C)
    """
    n, c = x_ref.shape[1], x_ref.shape[2]
    cdt = compute_dtype

    def mx(t):
        # Cast an MXU operand once; no-op on the pure-f32 path.
        return t if t.dtype == cdt else t.astype(cdt)

    x = x_ref[0]                                              # (N, C), f32 residual

    # ---- fused QKV projection: one (N, C) x (C, 3C) MXU matmul, f32 accum ----
    qkv = jnp.dot(mx(x), mx(wqkv_ref[...]),
                  preferred_element_type=jnp.float32) + bqkv_ref[...]   # (N, 3C)

    # ---- split heads once into a batched (H, N, hd) layout ----
    def heads(col_off):
        return jnp.stack(
            [qkv[:, col_off + h * head_dim: col_off + (h + 1) * head_dim]
             for h in range(n_head)], axis=0)                 # (H, N, hd)

    scale = jnp.float32(1.0 / math.sqrt(head_dim))
    q = heads(0) * scale          # fold softmax scale into q
    k = heads(c)
    v = heads(2 * c)

    # ---- attention scores for all heads: one batched MXU contraction ----
    scores = jnp.einsum('hqd,hkd->hqk', mx(q), mx(k),
                        preferred_element_type=jnp.float32)   # (H, N, N), f32

    if causal_mask:
        # Built once for all heads; finite additive mask avoids -inf NaN paths.
        row = jax.lax.broadcasted_iota(jnp.int32, (n, n), 0)
        col = jax.lax.broadcasted_iota(jnp.int32, (n, n), 1)
        scores = scores + jnp.where(col > row,
                                    jnp.float32(-1e30), jnp.float32(0.0))

    # ---- numerically stable softmax (f32); EUP reciprocal + Newton step ----
    m = jnp.max(scores, axis=-1, keepdims=True)
    p = jnp.exp(scores - m)
    denom = jnp.sum(p, axis=-1, keepdims=True)
    r = pl.reciprocal(denom, approx=True)
    r = r * (2.0 - denom * r)                                 # one Newton refinement
    attn = p * r

    # TODO(synk): attention dropout omitted (eval-mode identity); no RNG
    # semantics requested for this kernel.

    # ---- weighted values, all heads batched ----
    o = jnp.einsum('hqk,hkd->hqd', mx(attn), mx(v),
                   preferred_element_type=jnp.float32)        # (H, N, hd)

    # ---- output projection folded per head (no lane-axis concat):
    #      sum_h o_h @ wo_h  ==  concat_h(o_h) @ wo
    parts = jnp.einsum('hqd,hdc->hqc', mx(o), mx(wo3_ref[...]),
                       preferred_element_type=jnp.float32)    # (H, N, C)
    proj = jnp.sum(parts, axis=0) + bo_ref[...]               # (N, C)

    out_ref[0] = (x + proj).astype(out_ref.dtype)             # residual


def multi_head_attention_block(x_nchw, params, *, n_head, causal_mask=False,
                               use_bf16=True):
    """Forward pass matching MultiHeadAttentionBlock.forward (dropout == identity).

    use_bf16: run MXU matmuls with bf16 operands (f32 accumulation) — the fast
    path on v6e/v7x.  Set False for bit-tight f32 compute.
    """
    b, c, h, w = x_nchw.shape
    assert c % n_head == 0, "channels must be divisible by n_head"
    n = h * w
    head_dim = c // n_head

    # NCHW -> (B, N, C)  (layout glue only)
    x_bnc = jnp.transpose(x_nchw.reshape(b, c, n), (0, 2, 1))

    wqkv, bqkv, wo, bo = params
    bqkv2 = bqkv.reshape(1, 3 * c)
    wo3 = wo.reshape(n_head, head_dim, c)     # head-major rows of w_o (wrapper glue)
    bo2 = bo.reshape(1, c)

    kernel = functools.partial(
        _mha_kernel, n_head=n_head, head_dim=head_dim, causal_mask=causal_mask,
        compute_dtype=jnp.bfloat16 if use_bf16 else jnp.float32)

    out_bnc = pl.pallas_call(
        kernel,
        out_shape=jax.ShapeDtypeStruct((b, n, c), x_bnc.dtype),
        grid_spec=pltpu.PrefetchScalarGridSpec(
            num_scalar_prefetch=0,
            grid=(b,),                               # parallel batch axis (v7x: 2 TCs)
            in_specs=[
                pl.BlockSpec((1, n, c), lambda i: (i, 0, 0)),
                pl.BlockSpec((c, 3 * c), lambda i: (0, 0)),
                pl.BlockSpec((1, 3 * c), lambda i: (0, 0)),
                pl.BlockSpec((n_head, head_dim, c), lambda i: (0, 0, 0)),
                pl.BlockSpec((1, c), lambda i: (0, 0)),
            ],
            out_specs=pl.BlockSpec((1, n, c), lambda i: (i, 0, 0)),
        ),
        compiler_params=pltpu.CompilerParams(
            dimension_semantics=("parallel",),
            # Tiny problem: default VMEM limits are fine.  For production N/C,
            # re-derive tiles against 64 MiB total VMEM on v7x and set
            # vmem_limit_bytes explicitly.
        ),
    )(x_bnc, wqkv, bqkv2, wo3, bo2)

    # (B, N, C) -> NCHW
    return jnp.transpose(out_bnc, (0, 2, 1)).reshape(b, c, h, w)


def _reference(x_nchw, params, *, n_head, causal_mask=False):
    """Pure-JAX reference of the PyTorch forward (dropout == identity)."""
    b, c, h, w = x_nchw.shape
    n = h * w
    hd = c // n_head
    wqkv, bqkv, wo, bo = params
    x = jnp.transpose(x_nchw.reshape(b, c, n), (0, 2, 1))          # (B, N, C)
    qkv = x @ wqkv + bqkv                                          # (B, N, 3C)
    q, k, v = jnp.split(qkv, 3, axis=-1)
    def heads(t):
        return jnp.transpose(t.reshape(b, n, n_head, hd), (0, 2, 1, 3))
    q, k, v = heads(q), heads(k), heads(v)
    s = jnp.einsum('bhqd,bhkd->bhqk', q, k) / math.sqrt(hd)
    if causal_mask:
        mask = jnp.triu(jnp.ones((n, n), bool), k=1)
        s = jnp.where(mask, -jnp.inf, s)
    a = jax.nn.softmax(s, axis=-1)
    o = jnp.einsum('bhqk,bhkd->bhqd', a, v)
    o = jnp.transpose(o, (0, 2, 1, 3)).reshape(b, n, c)
    out = x + (o @ wo + bo)
    return jnp.transpose(out, (0, 2, 1)).reshape(b, c, h, w)


def init_params(key, channels):
    """Deterministic nn.Linear-style (uniform) init. Weights stored (in, out)."""
    k1, k2, k3, k4 = jax.random.split(key, 4)
    bound = 1.0 / math.sqrt(channels)
    wqkv = jax.random.uniform(k1, (channels, 3 * channels), jnp.float32, -bound, bound)
    bqkv = jax.random.uniform(k2, (3 * channels,), jnp.float32, -bound, bound)
    wo = jax.random.uniform(k3, (channels, channels), jnp.float32, -bound, bound)
    bo = jax.random.uniform(k4, (channels,), jnp.float32, -bound, bound)
    return (wqkv, bqkv, wo, bo)


if __name__ == "__main__":
    B, C, H, W = 2, 32, 8, 8           # channels=32, n_head=4 -> head_dim=8, N=64
    N_HEAD = 4

    key = jax.random.PRNGKey(0)
    kx, kp = jax.random.split(key)
    x = jax.random.normal(kx, (B, C, H, W), jnp.float32)
    params = init_params(kp, C)

    # 1) f32 compute path (tight tolerance)
    out = multi_head_attention_block(x, params, n_head=N_HEAD,
                                     causal_mask=False, use_bf16=False)
    out = jax.block_until_ready(out)
    ref = _reference(x, params, n_head=N_HEAD, causal_mask=False)
    np.testing.assert_allclose(np.asarray(out), np.asarray(ref),
                               rtol=2e-4, atol=2e-4)
    assert out.shape == (B, C, H, W)

    # 2) bf16 MXU-operand path (v6e/v7x fast path), looser tolerance
    out_bf = multi_head_attention_block(x, params, n_head=N_HEAD,
                                        causal_mask=False, use_bf16=True)
    out_bf = jax.block_until_ready(out_bf)
    np.testing.assert_allclose(np.asarray(out_bf), np.asarray(ref),
                               rtol=5e-2, atol=5e-2)

    # 3) causal-mask path, f32
    out_c = multi_head_attention_block(x, params, n_head=N_HEAD,
                                       causal_mask=True, use_bf16=False)
    out_c = jax.block_until_ready(out_c)
    ref_c = _reference(x, params, n_head=N_HEAD, causal_mask=True)
    np.testing.assert_allclose(np.asarray(out_c), np.asarray(ref_c),
                               rtol=2e-4, atol=2e-4)

    print("KERNEL_OK")
</pallas_src>

<mosaic_0001>
module attributes {stable_mosaic.version = 11 : i64} {
  func.func @_mha_kernel(%arg0: i32, %arg1: memref<1x64x32xf32, #tpu.memory_space<vmem>>, %arg2: memref<32x96xf32, #tpu.memory_space<vmem>>, %arg3: memref<1x96xf32, #tpu.memory_space<vmem>>, %arg4: memref<4x8x32xf32, #tpu.memory_space<vmem>>, %arg5: memref<1x32xf32, #tpu.memory_space<vmem>>, %arg6: memref<1x64x32xf32, #tpu.memory_space<vmem>>) attributes {dimension_semantics = [#tpu.dimension_semantics<parallel>], iteration_bounds = array<i64: 2>, scalar_prefetch = 0 : i64, scratch_operands = 0 : i64, tpu.core_type = #tpu.core_type<tc>, window_params = [{transform_indices = @transform_0, window_bounds = array<i64: 1, 64, 32>}, {pipeline_mode = #tpu.pipeline_mode<synchronous>, transform_indices = @transform_1, window_bounds = array<i64: 32, 96>}, {pipeline_mode = #tpu.pipeline_mode<synchronous>, transform_indices = @transform_2, window_bounds = array<i64: 1, 96>}, {pipeline_mode = #tpu.pipeline_mode<synchronous>, transform_indices = @transform_3, window_bounds = array<i64: 4, 8, 32>}, {pipeline_mode = #tpu.pipeline_mode<synchronous>, transform_indices = @transform_4, window_bounds = array<i64: 1, 32>}, {transform_indices = @transform_5, window_bounds = array<i64: 1, 64, 32>}]} {
    %c0 = arith.constant 0 : index
    %c0_0 = arith.constant 0 : index
    %c0_1 = arith.constant 0 : index
    %0 = vector.load %arg1[%c0, %c0_0, %c0_1] : memref<1x64x32xf32, #tpu.memory_space<vmem>>, vector<1x64x32xf32>
    %1 = vector.shape_cast %0 : vector<1x64x32xf32> to vector<64x32xf32>
    %c0_2 = arith.constant 0 : index
    %c0_3 = arith.constant 0 : index
    %2 = vector.load %arg2[%c0_2, %c0_3] : memref<32x96xf32, #tpu.memory_space<vmem>>, vector<32x96xf32>
    %cst = arith.constant dense<0.000000e+00> : vector<64x96xf32>
    %3 = tpu.matmul %1, %2, %cst {dimension_numbers = #tpu.dot_dimension_numbers<[1], [0], [0], [1], [0, 0, 1, 1], [], []>} : vector<64x32xf32>, vector<32x96xf32>, vector<64x96xf32> -> vector<64x96xf32>
    %c0_4 = arith.constant 0 : index
    %c0_5 = arith.constant 0 : index
    %4 = vector.load %arg3[%c0_4, %c0_5] : memref<1x96xf32, #tpu.memory_space<vmem>>, vector<1x96xf32>
    %5 = vector.broadcast %4 : vector<1x96xf32> to vector<64x96xf32>
    %6 = arith.addf %3, %5 : vector<64x96xf32>
    %7 = vector.extract_strided_slice %6 {offsets = [0, 0], sizes = [64, 8], strides = [1, 1]} : vector<64x96xf32> to vector<64x8xf32>
    %8 = vector.extract_strided_slice %6 {offsets = [0, 8], sizes = [64, 8], strides = [1, 1]} : vector<64x96xf32> to vector<64x8xf32>
    %9 = vector.extract_strided_slice %6 {offsets = [0, 16], sizes = [64, 8], strides = [1, 1]} : vector<64x96xf32> to vector<64x8xf32>
    %10 = vector.extract_strided_slice %6 {offsets = [0, 24], sizes = [64, 8], strides = [1, 1]} : vector<64x96xf32> to vector<64x8xf32>
    %11 = vector.shape_cast %7 : vector<64x8xf32> to vector<1x64x8xf32>
    %12 = vector.shape_cast %8 : vector<64x8xf32> to vector<1x64x8xf32>
    %13 = vector.shape_cast %9 : vector<64x8xf32> to vector<1x64x8xf32>
    %14 = vector.shape_cast %10 : vector<64x8xf32> to vector<1x64x8xf32>
    %15 = tpu.concatenate %11, %12, %13, %14 in 0 : vector<1x64x8xf32>, vector<1x64x8xf32>, vector<1x64x8xf32>, vector<1x64x8xf32> -> vector<4x64x8xf32>
    %cst_6 = arith.constant 0.353553385 : f32
    %16 = vector.broadcast %cst_6 : f32 to vector<4x64x8xf32>
    %17 = arith.mulf %15, %16 : vector<4x64x8xf32>
    %18 = vector.extract_strided_slice %6 {offsets = [0, 32], sizes = [64, 8], strides = [1, 1]} : vector<64x96xf32> to vector<64x8xf32>
    %19 = vector.extract_strided_slice %6 {offsets = [0, 40], sizes = [64, 8], strides = [1, 1]} : vector<64x96xf32> to vector<64x8xf32>
    %20 = vector.extract_strided_slice %6 {offsets = [0, 48], sizes = [64, 8], strides = [1, 1]} : vector<64x96xf32> to vector<64x8xf32>
    %21 = vector.extract_strided_slice %6 {offsets = [0, 56], sizes = [64, 8], strides = [1, 1]} : vector<64x96xf32> to vector<64x8xf32>
    %22 = vector.shape_cast %18 : vector<64x8xf32> to vector<1x64x8xf32>
    %23 = vector.shape_cast %19 : vector<64x8xf32> to vector<1x64x8xf32>
    %24 = vector.shape_cast %20 : vector<64x8xf32> to vector<1x64x8xf32>
    %25 = vector.shape_cast %21 : vector<64x8xf32> to vector<1x64x8xf32>
    %26 = tpu.concatenate %22, %23, %24, %25 in 0 : vector<1x64x8xf32>, vector<1x64x8xf32>, vector<1x64x8xf32>, vector<1x64x8xf32> -> vector<4x64x8xf32>
    %27 = vector.extract_strided_slice %6 {offsets = [0, 64], sizes = [64, 8], strides = [1, 1]} : vector<64x96xf32> to vector<64x8xf32>
    %28 = vector.extract_strided_slice %6 {offsets = [0, 72], sizes = [64, 8], strides = [1, 1]} : vector<64x96xf32> to vector<64x8xf32>
    %29 = vector.extract_strided_slice %6 {offsets = [0, 80], sizes = [64, 8], strides = [1, 1]} : vector<64x96xf32> to vector<64x8xf32>
    %30 = vector.extract_strided_slice %6 {offsets = [0, 88], sizes = [64, 8], strides = [1, 1]} : vector<64x96xf32> to vector<64x8xf32>
    %31 = vector.shape_cast %27 : vector<64x8xf32> to vector<1x64x8xf32>
    %32 = vector.shape_cast %28 : vector<64x8xf32> to vector<1x64x8xf32>
    %33 = vector.shape_cast %29 : vector<64x8xf32> to vector<1x64x8xf32>
    %34 = vector.shape_cast %30 : vector<64x8xf32> to vector<1x64x8xf32>
    %35 = tpu.concatenate %31, %32, %33, %34 in 0 : vector<1x64x8xf32>, vector<1x64x8xf32>, vector<1x64x8xf32>, vector<1x64x8xf32> -> vector<4x64x8xf32>
    "tpu.trace_start"() <{level = 10 : i32, message = "hqd,hkd->hqk"}> : () -> ()
    %cst_7 = arith.constant dense<0.000000e+00> : vector<4x64x64xf32>
    %36 = tpu.matmul %17, %26, %cst_7 {dimension_numbers = #tpu.dot_dimension_numbers<[2], [2], [1], [1], [0, 0, 0, 1, 1, 1], [0], [0]>} : vector<4x64x8xf32>, vector<4x64x8xf32>, vector<4x64x64xf32> -> vector<4x64x64xf32>
    "tpu.trace_stop"() : () -> ()
    %cst_8 = arith.constant dense<0xFF800000> : vector<4x64xf32>
    %37 = vector.multi_reduction <maximumf>, %36, %cst_8 [2] : vector<4x64x64xf32> to vector<4x64xf32>
    %38 = vector.shape_cast %37 : vector<4x64xf32> to vector<4x64x1xf32>
    %39 = vector.broadcast %38 : vector<4x64x1xf32> to vector<4x64x64xf32>
    %40 = arith.subf %36, %39 : vector<4x64x64xf32>
    %41 = math.exp %40 : vector<4x64x64xf32>
    %cst_9 = arith.constant dense<0.000000e+00> : vector<4x64xf32>
    %42 = vector.multi_reduction <add>, %41, %cst_9 [2] : vector<4x64x64xf32> to vector<4x64xf32>
    %43 = vector.shape_cast %42 : vector<4x64xf32> to vector<4x64x1xf32>
    %44 = tpu.reciprocal %43 {approx = true} : vector<4x64x1xf32> -> vector<4x64x1xf32>
    %45 = arith.mulf %43, %44 : vector<4x64x1xf32>
    %cst_10 = arith.constant 2.000000e+00 : f32
    %46 = vector.broadcast %cst_10 : f32 to vector<4x64x1xf32>
    %47 = arith.subf %46, %45 : vector<4x64x1xf32>
    %48 = arith.mulf %44, %47 : vector<4x64x1xf32>
    %49 = vector.broadcast %48 : vector<4x64x1xf32> to vector<4x64x64xf32>
    %50 = arith.mulf %41, %49 : vector<4x64x64xf32>
    "tpu.trace_start"() <{level = 10 : i32, message = "hqk,hkd->hqd"}> : () -> ()
    %cst_11 = arith.constant dense<0.000000e+00> : vector<4x64x8xf32>
    %51 = tpu.matmul %50, %35, %cst_11 {dimension_numbers = #tpu.dot_dimension_numbers<[2], [1], [1], [2], [0, 0, 0, 1, 1, 2], [0], [0]>} : vector<4x64x64xf32>, vector<4x64x8xf32>, vector<4x64x8xf32> -> vector<4x64x8xf32>
    "tpu.trace_stop"() : () -> ()
    %c0_12 = arith.constant 0 : index
    %c0_13 = arith.constant 0 : index
    %c0_14 = arith.constant 0 : index
    %52 = vector.load %arg4[%c0_12, %c0_13, %c0_14] : memref<4x8x32xf32, #tpu.memory_space<vmem>>, vector<4x8x32xf32>
    "tpu.trace_start"() <{level = 10 : i32, message = "hqd,hdc->hqc"}> : () -> ()
    %cst_15 = arith.constant dense<0.000000e+00> : vector<4x64x32xf32>
    %53 = tpu.matmul %51, %52, %cst_15 {dimension_numbers = #tpu.dot_dimension_numbers<[2], [1], [1], [2], [0, 0, 0, 1, 1, 2], [0], [0]>} : vector<4x64x8xf32>, vector<4x8x32xf32>, vector<4x64x32xf32> -> vector<4x64x32xf32>
    "tpu.trace_stop"() : () -> ()
    %cst_16 = arith.constant dense<0.000000e+00> : vector<64x32xf32>
    %54 = vector.multi_reduction <add>, %53, %cst_16 [0] : vector<4x64x32xf32> to vector<64x32xf32>
    %c0_17 = arith.constant 0 : index
    %c0_18 = arith.constant 0 : index
    %55 = vector.load %arg5[%c0_17, %c0_18] : memref<1x32xf32, #tpu.memory_space<vmem>>, vector<1x32xf32>
    %56 = vector.broadcast %55 : vector<1x32xf32> to vector<64x32xf32>
    %57 = arith.addf %54, %56 : vector<64x32xf32>
    %58 = arith.addf %1, %57 : vector<64x32xf32>
    %c0_19 = arith.constant 0 : index
    %c0_20 = arith.constant 0 : index
    %c0_21 = arith.constant 0 : index
    %59 = vector.load %arg6[%c0_19, %c0_20, %c0_21] : memref<1x64x32xf32, #tpu.memory_space<vmem>>, vector<1x64x32xf32>
    %60 = vector.shape_cast %59 : vector<1x64x32xf32> to vector<64x32xf32>
    %61 = vector.shape_cast %58 : vector<64x32xf32> to vector<1x64x32xf32>
    tpu.vector_store %arg6[%c0_19, %c0_20, %c0_21], %61 {strides = array<i32>} : memref<1x64x32xf32, #tpu.memory_space<vmem>>, vector<1x64x32xf32>,
    return
  }
  func.func @transform_0(%arg0: i32) -> (i32, i32, i32) {
    %c0_i32 = arith.constant 0 : i32
    %c0_i32_0 = arith.constant 0 : i32
    %c0_i32_1 = arith.constant 0 : i32
    return %arg0, %c0_i32, %c0_i32_0 : i32, i32, i32
  }
  func.func @transform_1(%arg0: i32) -> (i32, i32) {
    %c0_i32 = arith.constant 0 : i32
    %c0_i32_0 = arith.constant 0 : i32
    %c0_i32_1 = arith.constant 0 : i32
    return %c0_i32, %c0_i32_0 : i32, i32
  }
  func.func @transform_2(%arg0: i32) -> (i32, i32) {
    %c0_i32 = arith.constant 0 : i32
    %c0_i32_0 = arith.constant 0 : i32
    %c0_i32_1 = arith.constant 0 : i32
    return %c0_i32, %c0_i32_0 : i32, i32
  }
  func.func @transform_3(%arg0: i32) -> (i32, i32, i32) {
    %c0_i32 = arith.constant 0 : i32
    %c0_i32_0 = arith.constant 0 : i32
    %c0_i32_1 = arith.constant 0 : i32
    %c0_i32_2 = arith.constant 0 : i32
    return %c0_i32, %c0_i32_0, %c0_i32_1 : i32, i32, i32
  }
  func.func @transform_4(%arg0: i32) -> (i32, i32) {
    %c0_i32 = arith.constant 0 : i32
    %c0_i32_0 = arith.constant 0 : i32
    %c0_i32_1 = arith.constant 0 : i32
    return %c0_i32, %c0_i32_0 : i32, i32
  }
  func.func @transform_5(%arg0: i32) -> (i32, i32, i32) {
    %c0_i32 = arith.constant 0 : i32
    %c0_i32_0 = arith.constant 0 : i32
    %c0_i32_1 = arith.constant 0 : i32
    return %arg0, %c0_i32, %c0_i32_0 : i32, i32, i32
  }
}

</mosaic_0001>

<llo_original>
// kernel: tpu_custom_call.1
$region0: #{tpu_custom_call.1}
  #allocation0 [shape = 'u32[]', space=smem, size = 0x4, offset = 0x4, fixed_abs, tag = 'smem constant byte address 0x4 - core index']
  #allocation1 [shape = 'u32[144,128]{1,0:T(1,128)}', space=vmem, size = 0x12000, scoped, tag = 'internal scratch']
  %s0 = inlined_call_operand.vmem [shape: f32[2,64,32], index: 0, kind: input, shape index: {}]
  %s1 = inlined_call_operand.vmem [shape: f32[32,96], index: 1, kind: input, shape index: {}]
  %s2 = inlined_call_operand.vmem [shape: f32[1,96], index: 2, kind: input, shape index: {}]
  %s3 = inlined_call_operand.vmem [shape: f32[4,8,32], index: 3, kind: input, shape index: {}]
  %s4 = inlined_call_operand.vmem [shape: f32[1,32], index: 4, kind: input, shape index: {}]
  %s5 = inlined_call_operand.vmem [shape: f32[2,64,32], index: 5, kind: output, shape index: {}]
  %s6 = sld [smem:[#allocation0]]
  $region53: #{tpu_custom_call.1} parent=0
    _
  %s8 = ssub.s32 1, %s6
  %s9 = scalar_select 0, %s8, %s6
  loop: start=0, step=1, limit=4
  $region2: #{tpu_custom_call.1} parent=0 // loop_pre_header
    _
  $region3: #{tpu_custom_call.1} parent=0 // loop_header
    %s11 = sphi 0, %s15
    %p12 = scmp.ge.s32.totalorder %s11, 4
    %s21 = sphi 0, %s23
    %s24 = sphi 0, %s21
    %s25 = sphi 0, %s24
    %s41 = sphi 0, %s25
    %s45 = sphi 0, %s45
    %s47 = sphi 0, %s45
    %s48 = sphi 0, %s47
    %s62 = sphi 0, %s48
    %s66 = sphi 0, %s66
    %s68 = sphi 0, %s66
    %s69 = sphi 0, %s68
    %s83 = sphi 0, %s69
    %s87 = sphi 0, %s87
    %s89 = sphi 0, %s87
    %s90 = sphi 0, %s89
    %s104 = sphi 0, %s90
    %s108 = sphi 0, %s108
    %s110 = sphi 0, %s108
    %s111 = sphi 0, %s110
    %s125 = sphi 0, %s111
    %s131 = sphi 0, %s133
    %s134 = sphi 0, %s131
    %s135 = sphi 0, %s134
    %s151 = sphi 0, %s135
  $region4: #{tpu_custom_call.1} parent=0 // loop_header_branch
    %14 = sbr.rel (%p12) target = $region8
  $region5: #{tpu_custom_call.1} parent=0 // loop_body
    %s16 = ssub.s32 %s11, 1
    %s17 = ssub.s32 %s11, 2
    %s18 = sadd.s32 %s11, 1
    %s19 = ssub.s32 %s11, %s18
    %p20 = scmp.eq.s32.totalorder %s19, 0
    %s22 = sadd.s32 %s21, 1
    %s23 = scalar_select %p20, %s21, %s22
    %p26 = pneg %p20
    %p27 = scmp.eq.s32.totalorder %s11, 1
    %p28 = por %p26, %p27
    %p29 = scmp.ne.s32.totalorder %s21, %s24
    %p30 = scmp.eq.s32.totalorder %s11, 0
    %p31 = por %p29, %p30
    %p32 = scmp.ne.s32.totalorder %s21, %s24
    %p33 = scmp.eq.s32.totalorder %s16, 1
    %p34 = por %p32, %p33
    %p35 = scmp.ne.s32.totalorder %s24, %s25
    %p36 = scmp.eq.s32.totalorder %s16, 0
    %p37 = por %p35, %p36
    %p38 = scmp.ne.s32.totalorder %s24, %s25
    %p39 = scmp.eq.s32.totalorder %s17, 1
    %p40 = por %p38, %p39
    %p42 = scmp.ne.s32.totalorder %s25, %s41
    %p43 = scmp.eq.s32.totalorder %s17, 0
    %p44 = por %p42, %p43
    %s46 = sadd.s32 %s45, 1
    %p49 = scmp.eq.s32.totalorder %s11, 1
    %p50 = scmp.ne.s32.totalorder %s45, %s47
    %p51 = scmp.eq.s32.totalorder %s11, 0
    %p52 = por %p50, %p51
    %p53 = scmp.ne.s32.totalorder %s45, %s47
    %p54 = scmp.eq.s32.totalorder %s16, 1
    %p55 = por %p53, %p54
    %p56 = scmp.ne.s32.totalorder %s47, %s48
    %p57 = scmp.eq.s32.totalorder %s16, 0
    %p58 = por %p56, %p57
    %p59 = scmp.ne.s32.totalorder %s47, %s48
    %p60 = scmp.eq.s32.totalorder %s17, 1
    %p61 = por %p59, %p60
    %p63 = scmp.ne.s32.totalorder %s48, %s62
    %p64 = scmp.eq.s32.totalorder %s17, 0
    %p65 = por %p63, %p64
    %s67 = sadd.s32 %s66, 1
    %p70 = scmp.eq.s32.totalorder %s11, 1
    %p71 = scmp.ne.s32.totalorder %s66, %s68
    %p72 = scmp.eq.s32.totalorder %s11, 0
    %p73 = por %p71, %p72
    %p74 = scmp.ne.s32.totalorder %s66, %s68
    %p75 = scmp.eq.s32.totalorder %s16, 1
    %p76 = por %p74, %p75
    %p77 = scmp.ne.s32.totalorder %s68, %s69
    %p78 = scmp.eq.s32.totalorder %s16, 0
    %p79 = por %p77, %p78
    %p80 = scmp.ne.s32.totalorder %s68, %s69
    %p81 = scmp.eq.s32.totalorder %s17, 1
    %p82 = por %p80, %p81
    %p84 = scmp.ne.s32.totalorder %s69, %s83
    %p85 = scmp.eq.s32.totalorder %s17, 0
    %p86 = por %p84, %p85
    %s88 = sadd.s32 %s87, 1
    %p91 = scmp.eq.s32.totalorder %s11, 1
    %p92 = scmp.ne.s32.totalorder %s87, %s89
    %p93 = scmp.eq.s32.totalorder %s11, 0
    %p94 = por %p92, %p93
    %p95 = scmp.ne.s32.totalorder %s87, %s89
    %p96 = scmp.eq.s32.totalorder %s16, 1
    %p97 = por %p95, %p96
    %p98 = scmp.ne.s32.totalorder %s89, %s90
    %p99 = scmp.eq.s32.totalorder %s16, 0
    %p100 = por %p98, %p99
    %p101 = scmp.ne.s32.totalorder %s89, %s90
    %p102 = scmp.eq.s32.totalorder %s17, 1
    %p103 = por %p101, %p102
    %p105 = scmp.ne.s32.totalorder %s90, %s104
    %p106 = scmp.eq.s32.totalorder %s17, 0
    %p107 = por %p105, %p106
    %s109 = sadd.s32 %s108, 1
    %p112 = scmp.eq.s32.totalorder %s11, 1
    %p113 = scmp.ne.s32.totalorder %s108, %s110
    %p114 = scmp.eq.s32.totalorder %s11, 0
    %p115 = por %p113, %p114
    %p116 = scmp.ne.s32.totalorder %s108, %s110
    %p117 = scmp.eq.s32.totalorder %s16, 1
    %p118 = por %p116, %p117
    %p119 = scmp.ne.s32.totalorder %s110, %s111
    %p120 = scmp.eq.s32.totalorder %s16, 0
    %p121 = por %p119, %p120
    %p122 = scmp.ne.s32.totalorder %s110, %s111
    %p123 = scmp.eq.s32.totalorder %s17, 1
    %p124 = por %p122, %p123
    %p126 = scmp.ne.s32.totalorder %s111, %s125
    %p127 = scmp.eq.s32.totalorder %s17, 0
    %p128 = por %p126, %p127
    %s129 = ssub.s32 %s11, %s18
    %p130 = scmp.eq.s32.totalorder %s129, 0
    %s132 = sadd.s32 %s131, 1
    %s133 = scalar_select %p130, %s131, %s132
    %p136 = pneg %p130
    %p137 = scmp.eq.s32.totalorder %s11, 1
    %p138 = por %p136, %p137
    %p139 = scmp.ne.s32.totalorder %s131, %s134
    %p140 = scmp.eq.s32.totalorder %s11, 0
    %p141 = por %p139, %p140
    %p142 = scmp.ne.s32.totalorder %s131, %s134
    %p143 = scmp.eq.s32.totalorder %s16, 1
    %p144 = por %p142, %p143
    %p145 = scmp.ne.s32.totalorder %s134, %s135
    %p146 = scmp.eq.s32.totalorder %s16, 0
    %p147 = por %p145, %p146
    %p148 = scmp.ne.s32.totalorder %s134, %s135
    %p149 = scmp.eq.s32.totalorder %s17, 1
    %p150 = por %p148, %p149
    %p152 = scmp.ne.s32.totalorder %s135, %s151
    %p153 = scmp.eq.s32.totalorder %s17, 0
    %p154 = por %p152, %p153
    %p155 = scmp.le.s32.totalorder 1, %s11
    %p156 = scmp.lt.s32.totalorder %s11, 3
    %p157 = pnand %p155, %p156
    %p158 = pneg %p157
    // Predicated region
    $region9: #{tpu_custom_call.1} parent=5 // pred_check
      _
    $region10: #{tpu_custom_call.1} parent=5 // pred_check_branch
      %160 = sbr.rel (%p157) target = $region12
    $region11: #{tpu_custom_call.1} parent=5 // pred_region
      %s161 = ssub.s32 %s11, 1
      // Predicated region
      $region13: #{tpu_custom_call.1} parent=11 // pred_check
        %p162 = pneg %p58
      $region14: #{tpu_custom_call.1} parent=11 // pred_check_branch
        %164 = sbr.rel (%p162) target = $region16
      $region15: #{tpu_custom_call.1} parent=11 // pred_region
        _
      $region16: #{tpu_custom_call.1} parent=11 // pred_fallthru
        _
      // Predicated region
      $region17: #{tpu_custom_call.1} parent=11 // pred_check
        %p165 = pneg %p79
      $region18: #{tpu_custom_call.1} parent=11 // pred_check_branch
        %167 = sbr.rel (%p165) target = $region20
      $region19: #{tpu_custom_call.1} parent=11 // pred_region
        _
      $region20: #{tpu_custom_call.1} parent=11 // pred_fallthru
        _
      // Predicated region
      $region21: #{tpu_custom_call.1} parent=11 // pred_check
        %p168 = pneg %p100
      $region22: #{tpu_custom_call.1} parent=11 // pred_check_branch
        %170 = sbr.rel (%p168) target = $region24
      $region23: #{tpu_custom_call.1} parent=11 // pred_region
        _
      $region24: #{tpu_custom_call.1} parent=11 // pred_fallthru
        _
      // Predicated region
      $region25: #{tpu_custom_call.1} parent=11 // pred_check
        %p171 = pneg %p121
      $region26: #{tpu_custom_call.1} parent=11 // pred_check_branch
        %173 = sbr.rel (%p171) target = $region28
      $region27: #{tpu_custom_call.1} parent=11 // pred_region
        _
      $region28: #{tpu_custom_call.1} parent=11 // pred_fallthru
        _
    $region12: #{tpu_custom_call.1} parent=5 // pred_fallthru
      _
    %p174 = scmp.lt.s32.totalorder %s11, 2
    // Predicated region
    $region29: #{tpu_custom_call.1} parent=5 // pred_check
      %p175 = pneg %p174
    $region30: #{tpu_custom_call.1} parent=5 // pred_check_branch
      %177 = sbr.rel (%p175) target = $region32
    $region31: #{tpu_custom_call.1} parent=5 // pred_region
      // Predicated region
      $region33: #{tpu_custom_call.1} parent=31 // pred_check
        %p178 = pneg %p31
      $region34: #{tpu_custom_call.1} parent=31 // pred_check_branch
        %180 = sbr.rel (%p178) target = $region36
      $region35: #{tpu_custom_call.1} parent=31 // pred_region
        %p181 = scmp.lt.s32.totalorder %s11, 1
        %s182 = scalar_select %p181, %s11, 1
        %s183 = smul.addr %s182, 8
        %s184 = smul.addr %s183, 8
        %s185 = scalar_lea.vmem %s0, %s184
      $region36: #{tpu_custom_call.1} parent=31 // pred_fallthru
        _
    $region32: #{tpu_custom_call.1} parent=5 // pred_fallthru
      _
    %p186 = scmp.le.s32.totalorder 1, %s11
    %p187 = scmp.lt.s32.totalorder %s11, 3
    %p188 = pnand %p186, %p187
    %p189 = pneg %p188
    // Predicated region
    $region37: #{tpu_custom_call.1} parent=5 // pred_check
      _
    $region38: #{tpu_custom_call.1} parent=5 // pred_check_branch
      %191 = sbr.rel (%p188) target = $region40
    $region39: #{tpu_custom_call.1} parent=5 // pred_region
      %s192 = ssub.s32 %s11, 1
      %p193 = scmp.lt.s32.totalorder %s16, 1
      %s194 = scalar_select %p193, %s16, 1
      %s195 = smul.addr %s194, 8
      %s196 = smul.addr %s195, 8
      %s197 = scalar_lea.vmem %s0, %s196
      %p198 = pneg %p37
      %p199 = pneg %p34
      %p200 = pneg %p58
      %p201 = pneg %p55
      %p202 = pneg %p79
      %p203 = pneg %p76
      %p204 = pneg %p100
      %p205 = pneg %p97
      %p206 = pneg %p121
      %p207 = pneg %p118
      %p208 = pneg %p147
      %p209 = pneg %p144
      %p210 = scmp.lt.s32.totalorder %s16, 1
      %s211 = scalar_select %p210, %s16, 1
      %s212 = smul.addr %s211, 8
      %s213 = smul.addr %s212, 8
      %s214 = scalar_lea.vmem %s5, %s213
      %p215 = scmp.lt.s32.totalorder %s16, 1
      %s216 = scalar_select %p215, %s16, 1
      %s217 = smul.addr %s216, 8
      %s218 = smul.addr %s217, 8
      %s219 = scalar_lea.vmem %s0, %s218
      %p220 = scmp.lt.s32.totalorder %s16, 1
      %s221 = scalar_select %p220, %s16, 1
      %s222 = smul.addr %s221, 8
      %s223 = smul.addr %s222, 8
      %s224 = scalar_lea.vmem %s5, %s223
      %v225 = vld [vmem:[%s219] sm:$0xff]
      %v226 = vld [vmem:[%s219 + $0x8] sm:$0xff]
      %v227 = vld [vmem:[%s219 + $0x10] sm:$0xff]
      %v228 = vld [vmem:[%s219 + $0x18] sm:$0xff]
      %v229 = vld [vmem:[%s219 + $0x20] sm:$0xff]
      %v230 = vld [vmem:[%s219 + $0x28] sm:$0xff]
      %v231 = vld [vmem:[%s219 + $0x30] sm:$0xff]
      %v232 = vld [vmem:[%s219 + $0x38] sm:$0xff]
      %v233 = vld [vmem:[%s1] sm:$0xff]
      %v234 = vld [vmem:[%s1 + $0x8] sm:$0xff]
      %v235 = vld [vmem:[%s1 + $0x10] sm:$0xff]
      %v236 = vld [vmem:[%s1 + $0x18] sm:$0xff]
      %v237 = vld [vmem:[%s2] sm:$0x1]
      %v239 = vlaneseq
      %v240 = vshrl.u32 %v239, 7
      %v241 = vsub.s32 0, %v240
      %v242 = vrot.slane %v237, %v241
      %vm244 = vcmask 261120
      %v246 = vsel %vm244, %v225, 0
      %v249 = vsel %vm244, %v226, 0
      %v252 = vsel %vm244, %v227, 0
      %v255 = vsel %vm244, %v228, 0
      %v258 = vsel %vm244, %v229, 0
      %v261 = vsel %vm244, %v230, 0
      %v264 = vsel %vm244, %v231, 0
      %v267 = vsel %vm244, %v232, 0
      %269 = vmatprep.subr.mxu0 0.0
      %270 = vmatpush1.msra.mxu0 %v233
      %271 = vmatprep.subr.mxu0 0.0
      %272 = vmatpush1.msra.mxu0 %v234
      %273 = vmatprep.subr.mxu0 0.0
      %274 = vmatpush1.msra.mxu0 %v235
      %275 = vmatprep.subr.mxu0 0.0
      %276 = vmatpush1.msra.mxu0 %v236
      %277 = vmatprep.subr.mxu0 0.0
      %278 = vmatpush1.msra.mxu0 0.0
      %279 = vmatprep.subr.mxu0 0.0
      %280 = vmatpush1.msra.mxu0 0.0
      %281 = vmatprep.subr.mxu0 0.0
      %282 = vmatpush1.msra.mxu0 0.0
      %283 = vmatprep.subr.mxu0 0.0
      %284 = vmatpush1.msra.mxu0 0.0
      %285 = vmatprep.subr.mxu0 0.0
      %286 = vmatpush1.msra.mxu0 0.0
      %287 = vmatprep.subr.mxu0 0.0
      %288 = vmatpush1.msra.mxu0 0.0
      %289 = vmatprep.subr.mxu0 0.0
      %290 = vmatpush1.msra.mxu0 0.0
      %291 = vmatprep.subr.mxu0 0.0
      %292 = vmatpush1.msra.mxu0 0.0
      %293 = vmatprep.subr.mxu0 0.0
      %294 = vmatpush1.msra.mxu0 0.0
      %295 = vmatprep.subr.mxu0 0.0
      %296 = vmatpush1.msra.mxu0 0.0
      %297 = vmatprep.subr.mxu0 0.0
      %298 = vmatpush1.msra.mxu0 0.0
      %299 = vmatprep.subr.mxu0 0.0
      %300 = vmatpush1.msra.mxu0 0.0
      %301 = vmatprep.subr.mxu0 0.0
      %302 = vmatpush1.msra.mxu0 0.0
      %303 = vmatprep.subr.mxu0 0.0
      %304 = vmatpush1.msra.mxu0 0.0
      %305 = vmatprep.subr.mxu0 0.0
      %306 = vmatpush1.msra.mxu0 0.0
      %307 = vmatprep.subr.mxu0 0.0
      %308 = vmatpush1.msra.mxu0 0.0
      %309 = vmatprep.subr.mxu0 0.0
      %310 = vmatpush1.msra.mxu0 0.0
      %311 = vmatprep.subr.mxu0 0.0
      %312 = vmatpush1.msra.mxu0 0.0
      %313 = vmatprep.subr.mxu0 0.0
      %314 = vmatpush1.msra.mxu0 0.0
      %315 = vmatprep.subr.mxu0 0.0
      %316 = vmatpush1.msra.mxu0 0.0
      %317 = vmatprep.subr.mxu0 0.0
      %318 = vmatpush1.msra.mxu0 0.0
      %319 = vmatprep.subr.mxu0 0.0
      %320 = vmatpush1.msra.mxu0 0.0
      %321 = vmatprep.subr.mxu0 0.0
      %322 = vmatpush1.msra.mxu0 0.0
      %323 = vmatprep.subr.mxu0 0.0
      %324 = vmatpush1.msra.mxu0 0.0
      %325 = vmatprep.subr.mxu0 0.0
      %326 = vmatpush1.msra.mxu0 0.0
      %327 = vmatprep.subr.mxu0 0.0
      %328 = vmatpush1.msra.mxu0 0.0
      %329 = vmatprep.subr.mxu0 0.0
      %330 = vmatpush1.msra.mxu0 0.0
      %331 = vmatprep.subr.mxu0 0.0
      %332 = vmatpush1.msra.mxu0 0.0
      %333 = vmatprep.mubr.f32.mxu0 0.0
      %334 = vmatmul.mubr.f32.gmra.mrb[0].mxu0 %v246
      %v335 = vpop.f32.mrb[0].mxu0
      %v336 = vadd.f32 %v242, %v335
      %v337 = vpop.f32.mrb[0].mxu0
      %338 = vmatprep.mubr.f32.mxu0 0.0
      %339 = vmatmul.mubr.f32.gmra.mrb[0].mxu0 %v249
      %v340 = vpop.f32.mrb[0].mxu0
      %v341 = vadd.f32 %v242, %v340
      %v342 = vpop.f32.mrb[0].mxu0
      %343 = vmatprep.mubr.f32.mxu0 0.0
      %344 = vmatmul.mubr.f32.gmra.mrb[0].mxu0 %v252
      %v345 = vpop.f32.mrb[0].mxu0
      %v346 = vadd.f32 %v242, %v345
      %v347 = vpop.f32.mrb[0].mxu0
      %348 = vmatprep.mubr.f32.mxu0 0.0
      %349 = vmatmul.mubr.f32.gmra.mrb[0].mxu0 %v255
      %v350 = vpop.f32.mrb[0].mxu0
      %v351 = vadd.f32 %v242, %v350
      %v352 = vpop.f32.mrb[0].mxu0
      %353 = vmatprep.mubr.f32.mxu0 0.0
      %354 = vmatmul.mubr.f32.gmra.mrb[0].mxu0 %v258
      %v355 = vpop.f32.mrb[0].mxu0
      %v356 = vadd.f32 %v242, %v355
      %v357 = vpop.f32.mrb[0].mxu0
      %358 = vmatprep.mubr.f32.mxu0 0.0
      %359 = vmatmul.mubr.f32.gmra.mrb[0].mxu0 %v261
      %v360 = vpop.f32.mrb[0].mxu0
      %v361 = vadd.f32 %v242, %v360
      %v362 = vpop.f32.mrb[0].mxu0
      %363 = vmatprep.mubr.f32.mxu0 0.0
      %364 = vmatmul.mubr.f32.gmra.mrb[0].mxu0 %v264
      %v365 = vpop.f32.mrb[0].mxu0
      %v366 = vadd.f32 %v242, %v365
      %v367 = vpop.f32.mrb[0].mxu0
      %368 = vmatprep.mubr.f32.mxu0 0.0
      %369 = vmatmul.mubr.f32.gmra.mrb[0].mxu0 %v267
      %v370 = vpop.f32.mrb[0].mxu0
      %v371 = vadd.f32 %v242, %v370
      %v372 = vpop.f32.mrb[0].mxu0
      %373 = vdwg.mxu0
      %382 = vrot.lane.b32.xlu0 %v336, 120
      %v383 = vpop.permute.xlu0 %382
      %384 = vrot.lane.b32.xlu0 %v341, 120
      %v385 = vpop.permute.xlu0 %384
      %386 = vrot.lane.b32.xlu0 %v346, 120
      %v387 = vpop.permute.xlu0 %386
      %388 = vrot.lane.b32.xlu0 %v351, 120
      %v389 = vpop.permute.xlu0 %388
      %390 = vrot.lane.b32.xlu0 %v356, 120
      %v391 = vpop.permute.xlu0 %390
      %392 = vrot.lane.b32.xlu0 %v361, 120
      %v393 = vpop.permute.xlu0 %392
      %394 = vrot.lane.b32.xlu0 %v366, 120
      %v395 = vpop.permute.xlu0 %394
      %396 = vrot.lane.b32.xlu0 %v371, 120
      %v397 = vpop.permute.xlu0 %396
      %406 = vrot.lane.b32.xlu0 %v336, 112
      %v407 = vpop.permute.xlu0 %406
      %408 = vrot.lane.b32.xlu0 %v341, 112
      %v409 = vpop.permute.xlu0 %408
      %410 = vrot.lane.b32.xlu0 %v346, 112
      %v411 = vpop.permute.xlu0 %410
      %412 = vrot.lane.b32.xlu0 %v351, 112
      %v413 = vpop.permute.xlu0 %412
      %414 = vrot.lane.b32.xlu0 %v356, 112
      %v415 = vpop.permute.xlu0 %414
      %416 = vrot.lane.b32.xlu0 %v361, 112
      %v417 = vpop.permute.xlu0 %416
      %418 = vrot.lane.b32.xlu0 %v366, 112
      %v419 = vpop.permute.xlu0 %418
      %420 = vrot.lane.b32.xlu0 %v371, 112
      %v421 = vpop.permute.xlu0 %420
      %430 = vrot.lane.b32.xlu0 %v336, 104
      %v431 = vpop.permute.xlu0 %430
      %432 = vrot.lane.b32.xlu0 %v341, 104
      %v433 = vpop.permute.xlu0 %432
      %434 = vrot.lane.b32.xlu0 %v346, 104
      %v435 = vpop.permute.xlu0 %434
      %436 = vrot.lane.b32.xlu0 %v351, 104
      %v437 = vpop.permute.xlu0 %436
      %438 = vrot.lane.b32.xlu0 %v356, 104
      %v439 = vpop.permute.xlu0 %438
      %440 = vrot.lane.b32.xlu0 %v361, 104
      %v441 = vpop.permute.xlu0 %440
      %442 = vrot.lane.b32.xlu0 %v366, 104
      %v443 = vpop.permute.xlu0 %442
      %444 = vrot.lane.b32.xlu0 %v371, 104
      %v445 = vpop.permute.xlu0 %444
      %v454 = vmul.f32 %v336, 0.35355338
      %v455 = vmul.f32 %v341, 0.35355338
      %v456 = vmul.f32 %v346, 0.35355338
      %v457 = vmul.f32 %v351, 0.35355338
      %v458 = vmul.f32 %v356, 0.35355338
      %v459 = vmul.f32 %v361, 0.35355338
      %v460 = vmul.f32 %v366, 0.35355338
      %v461 = vmul.f32 %v371, 0.35355338
      %v462 = vmul.f32 %v383, 0.35355338
      %v463 = vmul.f32 %v385, 0.35355338
      %v464 = vmul.f32 %v387, 0.35355338
      %v465 = vmul.f32 %v389, 0.35355338
      %v466 = vmul.f32 %v391, 0.35355338
      %v467 = vmul.f32 %v393, 0.35355338
      %v468 = vmul.f32 %v395, 0.35355338
      %v469 = vmul.f32 %v397, 0.35355338
      %v470 = vmul.f32 %v407, 0.35355338
      %v471 = vmul.f32 %v409, 0.35355338
      %v472 = vmul.f32 %v411, 0.35355338
      %v473 = vmul.f32 %v413, 0.35355338
      %v474 = vmul.f32 %v415, 0.35355338
      %v475 = vmul.f32 %v417, 0.35355338
      %v476 = vmul.f32 %v419, 0.35355338
      %v477 = vmul.f32 %v421, 0.35355338
      %v478 = vmul.f32 %v431, 0.35355338
      %v479 = vmul.f32 %v433, 0.35355338
      %v480 = vmul.f32 %v435, 0.35355338
      %v481 = vmul.f32 %v437, 0.35355338
      %v482 = vmul.f32 %v439, 0.35355338
      %v483 = vmul.f32 %v441, 0.35355338
      %v484 = vmul.f32 %v443, 0.35355338
      %v485 = vmul.f32 %v445, 0.35355338
      %486 = vrot.lane.b32.xlu0 %v336, 96
      %v487 = vpop.permute.xlu0 %486
      %488 = vrot.lane.b32.xlu0 %v341, 96
      %v489 = vpop.permute.xlu0 %488
      %490 = vrot.lane.b32.xlu0 %v346, 96
      %v491 = vpop.permute.xlu0 %490
      %492 = vrot.lane.b32.xlu0 %v351, 96
      %v493 = vpop.permute.xlu0 %492
      %494 = vrot.lane.b32.xlu0 %v356, 96
      %v495 = vpop.permute.xlu0 %494
      %496 = vrot.lane.b32.xlu0 %v361, 96
      %v497 = vpop.permute.xlu0 %496
      %498 = vrot.lane.b32.xlu0 %v366, 96
      %v499 = vpop.permute.xlu0 %498
      %500 = vrot.lane.b32.xlu0 %v371, 96
      %v501 = vpop.permute.xlu0 %500
      %vm502 = vcmask 64512
      %v504 = vsel %vm502, %v454, 0
      %v507 = vsel %vm502, %v455, 0
      %v510 = vsel %vm502, %v456, 0
      %v513 = vsel %vm502, %v457, 0
      %v516 = vsel %vm502, %v458, 0
      %v519 = vsel %vm502, %v459, 0
      %v522 = vsel %vm502, %v460, 0
      %v525 = vsel %vm502, %v461, 0
      %v527 = vsel %vm502, %v487, 0
      %v529 = vsel %vm502, %v489, 0
      %v531 = vsel %vm502, %v491, 0
      %v533 = vsel %vm502, %v493, 0
      %v535 = vsel %vm502, %v495, 0
      %v537 = vsel %vm502, %v497, 0
      %v539 = vsel %vm502, %v499, 0
      %v541 = vsel %vm502, %v501, 0
      %543 = vmatprep.subr.mxu0 0.0
      %544 = vmatpush1.xpose.msra.mxu0 %v527
      %545 = vmatprep.subr.mxu0 0.0
      %546 = vmatpush1.xpose.msra.mxu0 %v529
      %547 = vmatprep.subr.mxu0 0.0
      %548 = vmatpush1.xpose.msra.mxu0 %v531
      %549 = vmatprep.subr.mxu0 0.0
      %550 = vmatpush1.xpose.msra.mxu0 %v533
      %551 = vmatprep.subr.mxu0 0.0
      %552 = vmatpush1.xpose.msra.mxu0 %v535
      %553 = vmatprep.subr.mxu0 0.0
      %554 = vmatpush1.xpose.msra.mxu0 %v537
      %555 = vmatprep.subr.mxu0 0.0
      %556 = vmatpush1.xpose.msra.mxu0 %v539
      %557 = vmatprep.subr.mxu0 0.0
      %558 = vmatpush1.xpose.msra.mxu0 %v541
      %559 = vmatprep.subr.mxu0 0.0
      %560 = vmatpush1.xpose.msra.mxu0 0.0
      %561 = vmatprep.subr.mxu0 0.0
      %562 = vmatpush1.xpose.msra.mxu0 0.0
      %563 = vmatprep.subr.mxu0 0.0
      %564 = vmatpush1.xpose.msra.mxu0 0.0
      %565 = vmatprep.subr.mxu0 0.0
      %566 = vmatpush1.xpose.msra.mxu0 0.0
      %567 = vmatprep.subr.mxu0 0.0
      %568 = vmatpush1.xpose.msra.mxu0 0.0
      %569 = vmatprep.subr.mxu0 0.0
      %570 = vmatpush1.xpose.msra.mxu0 0.0
      %571 = vmatprep.subr.mxu0 0.0
      %572 = vmatpush1.xpose.msra.mxu0 0.0
      %573 = vmatprep.subr.mxu0 0.0
      %574 = vmatpush1.xpose.msra.mxu0 0.0
      %575 = vmatprep.subr.mxu0 0.0
      %576 = vmatpush1.xpose.msra.mxu0 0.0
      %577 = vmatprep.subr.mxu0 0.0
      %578 = vmatpush1.xpose.msra.mxu0 0.0
      %579 = vmatprep.subr.mxu0 0.0
      %580 = vmatpush1.xpose.msra.mxu0 0.0
      %581 = vmatprep.subr.mxu0 0.0
      %582 = vmatpush1.xpose.msra.mxu0 0.0
      %583 = vmatprep.subr.mxu0 0.0
      %584 = vmatpush1.xpose.msra.mxu0 0.0
      %585 = vmatprep.subr.mxu0 0.0
      %586 = vmatpush1.xpose.msra.mxu0 0.0
      %587 = vmatprep.subr.mxu0 0.0
      %588 = vmatpush1.xpose.msra.mxu0 0.0
      %589 = vmatprep.subr.mxu0 0.0
      %590 = vmatpush1.xpose.msra.mxu0 0.0
      %591 = vmatprep.subr.mxu0 0.0
      %592 = vmatpush1.xpose.msra.mxu0 0.0
      %593 = vmatprep.subr.mxu0 0.0
      %594 = vmatpush1.xpose.msra.mxu0 0.0
      %595 = vmatprep.subr.mxu0 0.0
      %596 = vmatpush1.xpose.msra.mxu0 0.0
      %597 = vmatprep.subr.mxu0 0.0
      %598 = vmatpush1.xpose.msra.mxu0 0.0
      %599 = vmatprep.subr.mxu0 0.0
      %600 = vmatpush1.xpose.msra.mxu0 0.0
      %601 = vmatprep.subr.mxu0 0.0
      %602 = vmatpush1.xpose.msra.mxu0 0.0
      %603 = vmatprep.subr.mxu0 0.0
      %604 = vmatpush1.xpose.msra.mxu0 0.0
      %605 = vmatprep.subr.mxu0 0.0
      %606 = vmatpush1.xpose.msra.mxu0 0.0
      %607 = vmatprep.mubr.f32.mxu0 0.0
      %608 = vmatmul.mubr.f32.gmra.mrb[0].mxu0 %v504
      %v609 = vpop.f32.mrb[0].mxu0
      %v610 = vadd.f32 0.0, %v609
      %v611 = vpop.f32.mrb[0].mxu0
      %612 = vmatprep.mubr.f32.mxu0 0.0
      %613 = vmatmul.mubr.f32.gmra.mrb[0].mxu0 %v507
      %v614 = vpop.f32.mrb[0].mxu0
      %v615 = vadd.f32 0.0, %v614
      %v616 = vpop.f32.mrb[0].mxu0
      %617 = vmatprep.mubr.f32.mxu0 0.0
      %618 = vmatmul.mubr.f32.gmra.mrb[0].mxu0 %v510
      %v619 = vpop.f32.mrb[0].mxu0
      %v620 = vadd.f32 0.0, %v619
      %v621 = vpop.f32.mrb[0].mxu0
      %622 = vmatprep.mubr.f32.mxu0 0.0
      %623 = vmatmul.mubr.f32.gmra.mrb[0].mxu0 %v513
      %v624 = vpop.f32.mrb[0].mxu0
      %v625 = vadd.f32 0.0, %v624
      %v626 = vpop.f32.mrb[0].mxu0
      %627 = vmatprep.mubr.f32.mxu0 0.0
      %628 = vmatmul.mubr.f32.gmra.mrb[0].mxu0 %v516
      %v629 = vpop.f32.mrb[0].mxu0
      %v630 = vadd.f32 0.0, %v629
      %v631 = vpop.f32.mrb[0].mxu0
      %632 = vmatprep.mubr.f32.mxu0 0.0
      %633 = vmatmul.mubr.f32.gmra.mrb[0].mxu0 %v519
      %v634 = vpop.f32.mrb[0].mxu0
      %v635 = vadd.f32 0.0, %v634
      %v636 = vpop.f32.mrb[0].mxu0
      %637 = vmatprep.mubr.f32.mxu0 0.0
      %638 = vmatmul.mubr.f32.gmra.mrb[0].mxu0 %v522
      %v639 = vpop.f32.mrb[0].mxu0
      %v640 = vadd.f32 0.0, %v639
      %v641 = vpop.f32.mrb[0].mxu0
      %642 = vmatprep.mubr.f32.mxu0 0.0
      %643 = vmatmul.mubr.f32.gmra.mrb[0].mxu0 %v525
      %v644 = vpop.f32.mrb[0].mxu0
      %v645 = vadd.f32 0.0, %v644
      %v646 = vpop.f32.mrb[0].mxu0
      %647 = vdwg.mxu0
      %648 = vrot.lane.b32.xlu0 %v383, 96
      %v649 = vpop.permute.xlu0 %648
      %650 = vrot.lane.b32.xlu0 %v385, 96
      %v651 = vpop.permute.xlu0 %650
      %652 = vrot.lane.b32.xlu0 %v387, 96
      %v653 = vpop.permute.xlu0 %652
      %654 = vrot.lane.b32.xlu0 %v389, 96
      %v655 = vpop.permute.xlu0 %654
      %656 = vrot.lane.b32.xlu0 %v391, 96
      %v657 = vpop.permute.xlu0 %656
      %658 = vrot.lane.b32.xlu0 %v393, 96
      %v659 = vpop.permute.xlu0 %658
      %660 = vrot.lane.b32.xlu0 %v395, 96
      %v661 = vpop.permute.xlu0 %660
      %662 = vrot.lane.b32.xlu0 %v397, 96
      %v663 = vpop.permute.xlu0 %662
      %v665 = vsel %vm502, %v462, 0
      %v668 = vsel %vm502, %v463, 0
      %v671 = vsel %vm502, %v464, 0
      %v674 = vsel %vm502, %v465, 0
      %v677 = vsel %vm502, %v466, 0
      %v680 = vsel %vm502, %v467, 0
      %v683 = vsel %vm502, %v468, 0
      %v686 = vsel %vm502, %v469, 0
      %v688 = vsel %vm502, %v649, 0
      %v690 = vsel %vm502, %v651, 0
      %v692 = vsel %vm502, %v653, 0
      %v694 = vsel %vm502, %v655, 0
      %v696 = vsel %vm502, %v657, 0
      %v698 = vsel %vm502, %v659, 0
      %v700 = vsel %vm502, %v661, 0
      %v702 = vsel %vm502, %v663, 0
      %704 = vmatprep.subr.mxu0 0.0
      %705 = vmatpush1.xpose.msra.mxu0 %v688
      %706 = vmatprep.subr.mxu0 0.0
      %707 = vmatpush1.xpose.msra.mxu0 %v690
      %708 = vmatprep.subr.mxu0 0.0
      %709 = vmatpush1.xpose.msra.mxu0 %v692
      %710 = vmatprep.subr.mxu0 0.0
      %711 = vmatpush1.xpose.msra.mxu0 %v694
      %712 = vmatprep.subr.mxu0 0.0
      %713 = vmatpush1.xpose.msra.mxu0 %v696
      %714 = vmatprep.subr.mxu0 0.0
      %715 = vmatpush1.xpose.msra.mxu0 %v698
      %716 = vmatprep.subr.mxu0 0.0
      %717 = vmatpush1.xpose.msra.mxu0 %v700
      %718 = vmatprep.subr.mxu0 0.0
      %719 = vmatpush1.xpose.msra.mxu0 %v702
      %720 = vmatprep.subr.mxu0 0.0
      %721 = vmatpush1.xpose.msra.mxu0 0.0
      %722 = vmatprep.subr.mxu0 0.0
      %723 = vmatpush1.xpose.msra.mxu0 0.0
      %724 = vmatprep.subr.mxu0 0.0
      %725 = vmatpush1.xpose.msra.mxu0 0.0
      %726 = vmatprep.subr.mxu0 0.0
      %727 = vmatpush1.xpose.msra.mxu0 0.0
      %728 = vmatprep.subr.mxu0 0.0
      %729 = vmatpush1.xpose.msra.mxu0 0.0
      %730 = vmatprep.subr.mxu0 0.0
      %731 = vmatpush1.xpose.msra.mxu0 0.0
      %732 = vmatprep.subr.mxu0 0.0
      %733 = vmatpush1.xpose.msra.mxu0 0.0
      %734 = vmatprep.subr.mxu0 0.0
      %735 = vmatpush1.xpose.msra.mxu0 0.0
      %736 = vmatprep.subr.mxu0 0.0
      %737 = vmatpush1.xpose.msra.mxu0 0.0
      %738 = vmatprep.subr.mxu0 0.0
      %739 = vmatpush1.xpose.msra.mxu0 0.0
      %740 = vmatprep.subr.mxu0 0.0
      %741 = vmatpush1.xpose.msra.mxu0 0.0
      %742 = vmatprep.subr.mxu0 0.0
      %743 = vmatpush1.xpose.msra.mxu0 0.0
      %744 = vmatprep.subr.mxu0 0.0
      %745 = vmatpush1.xpose.msra.mxu0 0.0
      %746 = vmatprep.subr.mxu0 0.0
      %747 = vmatpush1.xpose.msra.mxu0 0.0
      %748 = vmatprep.subr.mxu0 0.0
      %749 = vmatpush1.xpose.msra.mxu0 0.0
      %750 = vmatprep.subr.mxu0 0.0
      %751 = vmatpush1.xpose.msra.mxu0 0.0
      %752 = vmatprep.subr.mxu0 0.0
      %753 = vmatpush1.xpose.msra.mxu0 0.0
      %754 = vmatprep.subr.mxu0 0.0
      %755 = vmatpush1.xpose.msra.mxu0 0.0
      %756 = vmatprep.subr.mxu0 0.0
      %757 = vmatpush1.xpose.msra.mxu0 0.0
      %758 = vmatprep.subr.mxu0 0.0
      %759 = vmatpush1.xpose.msra.mxu0 0.0
      %760 = vmatprep.subr.mxu0 0.0
      %761 = vmatpush1.xpose.msra.mxu0 0.0
      %762 = vmatprep.subr.mxu0 0.0
      %763 = vmatpush1.xpose.msra.mxu0 0.0
      %764 = vmatprep.subr.mxu0 0.0
      %765 = vmatpush1.xpose.msra.mxu0 0.0
      %766 = vmatprep.subr.mxu0 0.0
      %767 = vmatpush1.xpose.msra.mxu0 0.0
      %768 = vmatprep.mubr.f32.mxu0 0.0
      %769 = vmatmul.mubr.f32.gmra.mrb[0].mxu0 %v665
      %v770 = vpop.f32.mrb[0].mxu0
      %v771 = vadd.f32 0.0, %v770
      %v772 = vpop.f32.mrb[0].mxu0
      %773 = vmatprep.mubr.f32.mxu0 0.0
      %774 = vmatmul.mubr.f32.gmra.mrb[0].mxu0 %v668
      %v775 = vpop.f32.mrb[0].mxu0
      %v776 = vadd.f32 0.0, %v775
      %v777 = vpop.f32.mrb[0].mxu0
      %778 = vmatprep.mubr.f32.mxu0 0.0
      %779 = vmatmul.mubr.f32.gmra.mrb[0].mxu0 %v671
      %v780 = vpop.f32.mrb[0].mxu0
      %v781 = vadd.f32 0.0, %v780
      %v782 = vpop.f32.mrb[0].mxu0
      %783 = vmatprep.mubr.f32.mxu0 0.0
      %784 = vmatmul.mubr.f32.gmra.mrb[0].mxu0 %v674
      %v785 = vpop.f32.mrb[0].mxu0
      %v786 = vadd.f32 0.0, %v785
      %v787 = vpop.f32.mrb[0].mxu0
      %788 = vmatprep.mubr.f32.mxu0 0.0
      %789 = vmatmul.mubr.f32.gmra.mrb[0].mxu0 %v677
      %v790 = vpop.f32.mrb[0].mxu0
      %v791 = vadd.f32 0.0, %v790
      %v792 = vpop.f32.mrb[0].mxu0
      %793 = vmatprep.mubr.f32.mxu0 0.0
      %794 = vmatmul.mubr.f32.gmra.mrb[0].mxu0 %v680
      %v795 = vpop.f32.mrb[0].mxu0
      %v796 = vadd.f32 0.0, %v795
      %v797 = vpop.f32.mrb[0].mxu0
      %798 = vmatprep.mubr.f32.mxu0 0.0
      %799 = vmatmul.mubr.f32.gmra.mrb[0].mxu0 %v683
      %v800 = vpop.f32.mrb[0].mxu0
      %v801 = vadd.f32 0.0, %v800
      %v802 = vpop.f32.mrb[0].mxu0
      %803 = vmatprep.mubr.f32.mxu0 0.0
      %804 = vmatmul.mubr.f32.gmra.mrb[0].mxu0 %v686
      %v805 = vpop.f32.mrb[0].mxu0
      %v806 = vadd.f32 0.0, %v805
      %v807 = vpop.f32.mrb[0].mxu0
      %808 = vdwg.mxu0
      %809 = vrot.lane.b32.xlu0 %v407, 96
      %v810 = vpop.permute.xlu0 %809
      %811 = vrot.lane.b32.xlu0 %v409, 96
      %v812 = vpop.permute.xlu0 %811
      %813 = vrot.lane.b32.xlu0 %v411, 96
      %v814 = vpop.permute.xlu0 %813
      %815 = vrot.lane.b32.xlu0 %v413, 96
      %v816 = vpop.permute.xlu0 %815
      %817 = vrot.lane.b32.xlu0 %v415, 96
      %v818 = vpop.permute.xlu0 %817
      %819 = vrot.lane.b32.xlu0 %v417, 96
      %v820 = vpop.permute.xlu0 %819
      %821 = vrot.lane.b32.xlu0 %v419, 96
      %v822 = vpop.permute.xlu0 %821
      %823 = vrot.lane.b32.xlu0 %v421, 96
      %v824 = vpop.permute.xlu0 %823
      %v826 = vsel %vm502, %v470, 0
      %v829 = vsel %vm502, %v471, 0
      %v832 = vsel %vm502, %v472, 0
      %v835 = vsel %vm502, %v473, 0
      %v838 = vsel %vm502, %v474, 0
      %v841 = vsel %vm502, %v475, 0
      %v844 = vsel %vm502, %v476, 0
      %v847 = vsel %vm502, %v477, 0
      %v849 = vsel %vm502, %v810, 0
      %v851 = vsel %vm502, %v812, 0
      %v853 = vsel %vm502, %v814, 0
      %v855 = vsel %vm502, %v816, 0
      %v857 = vsel %vm502, %v818, 0
      %v859 = vsel %vm502, %v820, 0
      %v861 = vsel %vm502, %v822, 0
      %v863 = vsel %vm502, %v824, 0
      %865 = vmatprep.subr.mxu0 0.0
      %866 = vmatpush1.xpose.msra.mxu0 %v849
      %867 = vmatprep.subr.mxu0 0.0
      %868 = vmatpush1.xpose.msra.mxu0 %v851
      %869 = vmatprep.subr.mxu0 0.0
      %870 = vmatpush1.xpose.msra.mxu0 %v853
      %871 = vmatprep.subr.mxu0 0.0
      %872 = vmatpush1.xpose.msra.mxu0 %v855
      %873 = vmatprep.subr.mxu0 0.0
      %874 = vmatpush1.xpose.msra.mxu0 %v857
      %875 = vmatprep.subr.mxu0 0.0
      %876 = vmatpush1.xpose.msra.mxu0 %v859
      %877 = vmatprep.subr.mxu0 0.0
      %878 = vmatpush1.xpose.msra.mxu0 %v861
      %879 = vmatprep.subr.mxu0 0.0
      %880 = vmatpush1.xpose.msra.mxu0 %v863
      %881 = vmatprep.subr.mxu0 0.0
      %882 = vmatpush1.xpose.msra.mxu0 0.0
      %883 = vmatprep.subr.mxu0 0.0
      %884 = vmatpush1.xpose.msra.mxu0 0.0
      %885 = vmatprep.subr.mxu0 0.0
      %886 = vmatpush1.xpose.msra.mxu0 0.0
      %887 = vmatprep.subr.mxu0 0.0
      %888 = vmatpush1.xpose.msra.mxu0 0.0
      %889 = vmatprep.subr.mxu0 0.0
      %890 = vmatpush1.xpose.msra.mxu0 0.0
      %891 = vmatprep.subr.mxu0 0.0
      %892 = vmatpush1.xpose.msra.mxu0 0.0
      %893 = vmatprep.subr.mxu0 0.0
      %894 = vmatpush1.xpose.msra.mxu0 0.0
      %895 = vmatprep.subr.mxu0 0.0
      %896 = vmatpush1.xpose.msra.mxu0 0.0
      %897 = vmatprep.subr.mxu0 0.0
      %898 = vmatpush1.xpose.msra.mxu0 0.0
      %899 = vmatprep.subr.mxu0 0.0
      %900 = vmatpush1.xpose.msra.mxu0 0.0
      %901 = vmatprep.subr.mxu0 0.0
      %902 = vmatpush1.xpose.msra.mxu0 0.0
      %903 = vmatprep.subr.mxu0 0.0
      %904 = vmatpush1.xpose.msra.mxu0 0.0
      %905 = vmatprep.subr.mxu0 0.0
      %906 = vmatpush1.xpose.msra.mxu0 0.0
      %907 = vmatprep.subr.mxu0 0.0
      %908 = vmatpush1.xpose.msra.mxu0 0.0
      %909 = vmatprep.subr.mxu0 0.0
      %910 = vmatpush1.xpose.msra.mxu0 0.0
      %911 = vmatprep.subr.mxu0 0.0
      %912 = vmatpush1.xpose.msra.mxu0 0.0
      %913 = vmatprep.subr.mxu0 0.0
      %914 = vmatpush1.xpose.msra.mxu0 0.0
      %915 = vmatprep.subr.mxu0 0.0
      %916 = vmatpush1.xpose.msra.mxu0 0.0
      %917 = vmatprep.subr.mxu0 0.0
      %918 = vmatpush1.xpose.msra.mxu0 0.0
      %919 = vmatprep.subr.mxu0 0.0
      %920 = vmatpush1.xpose.msra.mxu0 0.0
      %921 = vmatprep.subr.mxu0 0.0
      %922 = vmatpush1.xpose.msra.mxu0 0.0
      %923 = vmatprep.subr.mxu0 0.0
      %924 = vmatpush1.xpose.msra.mxu0 0.0
      %925 = vmatprep.subr.mxu0 0.0
      %926 = vmatpush1.xpose.msra.mxu0 0.0
      %927 = vmatprep.subr.mxu0 0.0
      %928 = vmatpush1.xpose.msra.mxu0 0.0
      %929 = vmatprep.mubr.f32.mxu0 0.0
      %930 = vmatmul.mubr.f32.gmra.mrb[0].mxu0 %v826
      %v931 = vpop.f32.mrb[0].mxu0
      %v932 = vadd.f32 0.0, %v931
      %v933 = vpop.f32.mrb[0].mxu0
      %934 = vmatprep.mubr.f32.mxu0 0.0
      %935 = vmatmul.mubr.f32.gmra.mrb[0].mxu0 %v829
      %v936 = vpop.f32.mrb[0].mxu0
      %v937 = vadd.f32 0.0, %v936
      %v938 = vpop.f32.mrb[0].mxu0
      %939 = vmatprep.mubr.f32.mxu0 0.0
      %940 = vmatmul.mubr.f32.gmra.mrb[0].mxu0 %v832
      %v941 = vpop.f32.mrb[0].mxu0
      %v942 = vadd.f32 0.0, %v941
      %v943 = vpop.f32.mrb[0].mxu0
      %944 = vmatprep.mubr.f32.mxu0 0.0
      %945 = vmatmul.mubr.f32.gmra.mrb[0].mxu0 %v835
      %v946 = vpop.f32.mrb[0].mxu0
      %v947 = vadd.f32 0.0, %v946
      %v948 = vpop.f32.mrb[0].mxu0
      %949 = vmatprep.mubr.f32.mxu0 0.0
      %950 = vmatmul.mubr.f32.gmra.mrb[0].mxu0 %v838
      %v951 = vpop.f32.mrb[0].mxu0
      %v952 = vadd.f32 0.0, %v951
      %v953 = vpop.f32.mrb[0].mxu0
      %954 = vmatprep.mubr.f32.mxu0 0.0
      %955 = vmatmul.mubr.f32.gmra.mrb[0].mxu0 %v841
      %v956 = vpop.f32.mrb[0].mxu0
      %v957 = vadd.f32 0.0, %v956
      %v958 = vpop.f32.mrb[0].mxu0
      %959 = vmatprep.mubr.f32.mxu0 0.0
      %960 = vmatmul.mubr.f32.gmra.mrb[0].mxu0 %v844
      %v961 = vpop.f32.mrb[0].mxu0
      %v962 = vadd.f32 0.0, %v961
      %v963 = vpop.f32.mrb[0].mxu0
      %964 = vmatprep.mubr.f32.mxu0 0.0
      %965 = vmatmul.mubr.f32.gmra.mrb[0].mxu0 %v847
      %v966 = vpop.f32.mrb[0].mxu0
      %v967 = vadd.f32 0.0, %v966
      %v968 = vpop.f32.mrb[0].mxu0
      %969 = vdwg.mxu0
      %970 = vrot.lane.b32.xlu0 %v431, 96
      %v971 = vpop.permute.xlu0 %970
      %972 = vrot.lane.b32.xlu0 %v433, 96
      %v973 = vpop.permute.xlu0 %972
      %974 = vrot.lane.b32.xlu0 %v435, 96
      %v975 = vpop.permute.xlu0 %974
      %976 = vrot.lane.b32.xlu0 %v437, 96
      %v977 = vpop.permute.xlu0 %976
      %978 = vrot.lane.b32.xlu0 %v439, 96
      %v979 = vpop.permute.xlu0 %978
      %980 = vrot.lane.b32.xlu0 %v441, 96
      %v981 = vpop.permute.xlu0 %980
      %982 = vrot.lane.b32.xlu0 %v443, 96
      %v983 = vpop.permute.xlu0 %982
      %984 = vrot.lane.b32.xlu0 %v445, 96
      %v985 = vpop.permute.xlu0 %984
      %v987 = vsel %vm502, %v478, 0
      %v990 = vsel %vm502, %v479, 0
      %v993 = vsel %vm502, %v480, 0
      %v996 = vsel %vm502, %v481, 0
      %v999 = vsel %vm502, %v482, 0
      %v1002 = vsel %vm502, %v483, 0
      %v1005 = vsel %vm502, %v484, 0
      %v1008 = vsel %vm502, %v485, 0
      %v1010 = vsel %vm502, %v971, 0
      %v1012 = vsel %vm502, %v973, 0
      %v1014 = vsel %vm502, %v975, 0
      %v1016 = vsel %vm502, %v977, 0
      %v1018 = vsel %vm502, %v979, 0
      %v1020 = vsel %vm502, %v981, 0
      %v1022 = vsel %vm502, %v983, 0
      %v1024 = vsel %vm502, %v985, 0
      %1026 = vmatprep.subr.mxu0 0.0
      %1027 = vmatpush1.xpose.msra.mxu0 %v1010
      %1028 = vmatprep.subr.mxu0 0.0
      %1029 = vmatpush1.xpose.msra.mxu0 %v1012
      %1030 = vmatprep.subr.mxu0 0.0
      %1031 = vmatpush1.xpose.msra.mxu0 %v1014
      %1032 = vmatprep.subr.mxu0 0.0
      %1033 = vmatpush1.xpose.msra.mxu0 %v1016
      %1034 = vmatprep.subr.mxu0 0.0
      %1035 = vmatpush1.xpose.msra.mxu0 %v1018
      %1036 = vmatprep.subr.mxu0 0.0
      %1037 = vmatpush1.xpose.msra.mxu0 %v1020
      %1038 = vmatprep.subr.mxu0 0.0
      %1039 = vmatpush1.xpose.msra.mxu0 %v1022
      %1040 = vmatprep.subr.mxu0 0.0
      %1041 = vmatpush1.xpose.msra.mxu0 %v1024
      %1042 = vmatprep.subr.mxu0 0.0
      %1043 = vmatpush1.xpose.msra.mxu0 0.0
      %1044 = vmatprep.subr.mxu0 0.0
      %1045 = vmatpush1.xpose.msra.mxu0 0.0
      %1046 = vmatprep.subr.mxu0 0.0
      %1047 = vmatpush1.xpose.msra.mxu0 0.0
      %1048 = vmatprep.subr.mxu0 0.0
      %1049 = vmatpush1.xpose.msra.mxu0 0.0
      %1050 = vmatprep.subr.mxu0 0.0
      %1051 = vmatpush1.xpose.msra.mxu0 0.0
      %1052 = vmatprep.subr.mxu0 0.0
      %1053 = vmatpush1.xpose.msra.mxu0 0.0
      %1054 = vmatprep.subr.mxu0 0.0
      %1055 = vmatpush1.xpose.msra.mxu0 0.0
      %1056 = vmatprep.subr.mxu0 0.0
      %1057 = vmatpush1.xpose.msra.mxu0 0.0
      %1058 = vmatprep.subr.mxu0 0.0
      %1059 = vmatpush1.xpose.msra.mxu0 0.0
      %1060 = vmatprep.subr.mxu0 0.0
      %1061 = vmatpush1.xpose.msra.mxu0 0.0
      %1062 = vmatprep.subr.mxu0 0.0
      %1063 = vmatpush1.xpose.msra.mxu0 0.0
      %1064 = vmatprep.subr.mxu0 0.0
      %1065 = vmatpush1.xpose.msra.mxu0 0.0
      %1066 = vmatprep.subr.mxu0 0.0
      %1067 = vmatpush1.xpose.msra.mxu0 0.0
      %1068 = vmatprep.subr.mxu0 0.0
      %1069 = vmatpush1.xpose.msra.mxu0 0.0
      %1070 = vmatprep.subr.mxu0 0.0
      %1071 = vmatpush1.xpose.msra.mxu0 0.0
      %1072 = vmatprep.subr.mxu0 0.0
      %1073 = vmatpush1.xpose.msra.mxu0 0.0
      %1074 = vmatprep.subr.mxu0 0.0
      %1075 = vmatpush1.xpose.msra.mxu0 0.0
      %1076 = vmatprep.subr.mxu0 0.0
      %1077 = vmatpush1.xpose.msra.mxu0 0.0
      %1078 = vmatprep.subr.mxu0 0.0
      %1079 = vmatpush1.xpose.msra.mxu0 0.0
      %1080 = vmatprep.subr.mxu0 0.0
      %1081 = vmatpush1.xpose.msra.mxu0 0.0
      %1082 = vmatprep.subr.mxu0 0.0
      %1083 = vmatpush1.xpose.msra.mxu0 0.0
      %1084 = vmatprep.subr.mxu0 0.0
      %1085 = vmatpush1.xpose.msra.mxu0 0.0
      %1086 = vmatprep.subr.mxu0 0.0
      %1087 = vmatpush1.xpose.msra.mxu0 0.0
      %1088 = vmatprep.subr.mxu0 0.0
      %1089 = vmatpush1.xpose.msra.mxu0 0.0
      %1090 = vmatprep.mubr.f32.mxu0 0.0
      %1091 = vmatmul.mubr.f32.gmra.mrb[0].mxu0 %v987
      %v1092 = vpop.f32.mrb[0].mxu0
      %v1093 = vadd.f32 0.0, %v1092
      %v1094 = vpop.f32.mrb[0].mxu0
      %1095 = vmatprep.mubr.f32.mxu0 0.0
      %1096 = vmatmul.mubr.f32.gmra.mrb[0].mxu0 %v990
      %v1097 = vpop.f32.mrb[0].mxu0
      %v1098 = vadd.f32 0.0, %v1097
      %v1099 = vpop.f32.mrb[0].mxu0
      %1100 = vmatprep.mubr.f32.mxu0 0.0
      %1101 = vmatmul.mubr.f32.gmra.mrb[0].mxu0 %v993
      %v1102 = vpop.f32.mrb[0].mxu0
      %v1103 = vadd.f32 0.0, %v1102
      %v1104 = vpop.f32.mrb[0].mxu0
      %1105 = vmatprep.mubr.f32.mxu0 0.0
      %1106 = vmatmul.mubr.f32.gmra.mrb[0].mxu0 %v996
      %v1107 = vpop.f32.mrb[0].mxu0
      %v1108 = vadd.f32 0.0, %v1107
      %v1109 = vpop.f32.mrb[0].mxu0
      %1110 = vmatprep.mubr.f32.mxu0 0.0
      %1111 = vmatmul.mubr.f32.gmra.mrb[0].mxu0 %v999
      %v1112 = vpop.f32.mrb[0].mxu0
      %v1113 = vadd.f32 0.0, %v1112
      %v1114 = vpop.f32.mrb[0].mxu0
      %1115 = vmatprep.mubr.f32.mxu0 0.0
      %1116 = vmatmul.mubr.f32.gmra.mrb[0].mxu0 %v1002
      %v1117 = vpop.f32.mrb[0].mxu0
      %v1118 = vadd.f32 0.0, %v1117
      %v1119 = vpop.f32.mrb[0].mxu0
      %1120 = vmatprep.mubr.f32.mxu0 0.0
      %1121 = vmatmul.mubr.f32.gmra.mrb[0].mxu0 %v1005
      %v1122 = vpop.f32.mrb[0].mxu0
      %v1123 = vadd.f32 0.0, %v1122
      %v1124 = vpop.f32.mrb[0].mxu0
      %1125 = vmatprep.mubr.f32.mxu0 0.0
      %1126 = vmatmul.mubr.f32.gmra.mrb[0].mxu0 %v1008
      %v1127 = vpop.f32.mrb[0].mxu0
      %v1128 = vadd.f32 0.0, %v1127
      %v1129 = vpop.f32.mrb[0].mxu0
      %1130 = vdwg.mxu0
      %vm1131 = vcmask 523264
      %v1132 = vsel %vm1131, %v610, -inf
      %1133 = vmax.xlane.f32.xlu0 %v1132
      %v1134 = vpop.xlane.xlu0 %1133
      %v1135 = vsel %vm1131, %v615, -inf
      %1136 = vmax.xlane.f32.xlu0 %v1135
      %v1137 = vpop.xlane.xlu0 %1136
      %v1138 = vsel %vm1131, %v620, -inf
      %1139 = vmax.xlane.f32.xlu0 %v1138
      %v1140 = vpop.xlane.xlu0 %1139
      %v1141 = vsel %vm1131, %v625, -inf
      %1142 = vmax.xlane.f32.xlu0 %v1141
      %v1143 = vpop.xlane.xlu0 %1142
      %v1144 = vsel %vm1131, %v630, -inf
      %1145 = vmax.xlane.f32.xlu0 %v1144
      %v1146 = vpop.xlane.xlu0 %1145
      %v1147 = vsel %vm1131, %v635, -inf
      %1148 = vmax.xlane.f32.xlu0 %v1147
      %v1149 = vpop.xlane.xlu0 %1148
      %v1150 = vsel %vm1131, %v640, -inf
      %1151 = vmax.xlane.f32.xlu0 %v1150
      %v1152 = vpop.xlane.xlu0 %1151
      %v1153 = vsel %vm1131, %v645, -inf
      %1154 = vmax.xlane.f32.xlu0 %v1153
      %v1155 = vpop.xlane.xlu0 %1154
      %v1156 = vsel %vm1131, %v771, -inf
      %1157 = vmax.xlane.f32.xlu0 %v1156
      %v1158 = vpop.xlane.xlu0 %1157
      %v1159 = vsel %vm1131, %v776, -inf
      %1160 = vmax.xlane.f32.xlu0 %v1159
      %v1161 = vpop.xlane.xlu0 %1160
      %v1162 = vsel %vm1131, %v781, -inf
      %1163 = vmax.xlane.f32.xlu0 %v1162
      %v1164 = vpop.xlane.xlu0 %1163
      %v1165 = vsel %vm1131, %v786, -inf
      %1166 = vmax.xlane.f32.xlu0 %v1165
      %v1167 = vpop.xlane.xlu0 %1166
      %v1168 = vsel %vm1131, %v791, -inf
      %1169 = vmax.xlane.f32.xlu0 %v1168
      %v1170 = vpop.xlane.xlu0 %1169
      %v1171 = vsel %vm1131, %v796, -inf
      %1172 = vmax.xlane.f32.xlu0 %v1171
      %v1173 = vpop.xlane.xlu0 %1172
      %v1174 = vsel %vm1131, %v801, -inf
      %1175 = vmax.xlane.f32.xlu0 %v1174
      %v1176 = vpop.xlane.xlu0 %1175
      %v1177 = vsel %vm1131, %v806, -inf
      %1178 = vmax.xlane.f32.xlu0 %v1177
      %v1179 = vpop.xlane.xlu0 %1178
      %v1180 = vsel %vm1131, %v932, -inf
      %1181 = vmax.xlane.f32.xlu0 %v1180
      %v1182 = vpop.xlane.xlu0 %1181
      %v1183 = vsel %vm1131, %v937, -inf
      %1184 = vmax.xlane.f32.xlu0 %v1183
      %v1185 = vpop.xlane.xlu0 %1184
      %v1186 = vsel %vm1131, %v942, -inf
      %1187 = vmax.xlane.f32.xlu0 %v1186
      %v1188 = vpop.xlane.xlu0 %1187
      %v1189 = vsel %vm1131, %v947, -inf
      %1190 = vmax.xlane.f32.xlu0 %v1189
      %v1191 = vpop.xlane.xlu0 %1190
      %v1192 = vsel %vm1131, %v952, -inf
      %1193 = vmax.xlane.f32.xlu0 %v1192
      %v1194 = vpop.xlane.xlu0 %1193
      %v1195 = vsel %vm1131, %v957, -inf
      %1196 = vmax.xlane.f32.xlu0 %v1195
      %v1197 = vpop.xlane.xlu0 %1196
      %v1198 = vsel %vm1131, %v962, -inf
      %1199 = vmax.xlane.f32.xlu0 %v1198
      %v1200 = vpop.xlane.xlu0 %1199
      %v1201 = vsel %vm1131, %v967, -inf
      %1202 = vmax.xlane.f32.xlu0 %v1201
      %v1203 = vpop.xlane.xlu0 %1202
      %v1204 = vsel %vm1131, %v1093, -inf
      %1205 = vmax.xlane.f32.xlu0 %v1204
      %v1206 = vpop.xlane.xlu0 %1205
      %v1207 = vsel %vm1131, %v1098, -inf
      %1208 = vmax.xlane.f32.xlu0 %v1207
      %v1209 = vpop.xlane.xlu0 %1208
      %v1210 = vsel %vm1131, %v1103, -inf
      %1211 = vmax.xlane.f32.xlu0 %v1210
      %v1212 = vpop.xlane.xlu0 %1211
      %v1213 = vsel %vm1131, %v1108, -inf
      %1214 = vmax.xlane.f32.xlu0 %v1213
      %v1215 = vpop.xlane.xlu0 %1214
      %v1216 = vsel %vm1131, %v1113, -inf
      %1217 = vmax.xlane.f32.xlu0 %v1216
      %v1218 = vpop.xlane.xlu0 %1217
      %v1219 = vsel %vm1131, %v1118, -inf
      %1220 = vmax.xlane.f32.xlu0 %v1219
      %v1221 = vpop.xlane.xlu0 %1220
      %v1222 = vsel %vm1131, %v1123, -inf
      %1223 = vmax.xlane.f32.xlu0 %v1222
      %v1224 = vpop.xlane.xlu0 %1223
      %v1225 = vsel %vm1131, %v1128, -inf
      %1226 = vmax.xlane.f32.xlu0 %v1225
      %v1227 = vpop.xlane.xlu0 %1226
      %v1228 = vsub.f32 %v610, %v1134
      %v1229 = vsub.f32 %v615, %v1137
      %v1230 = vsub.f32 %v620, %v1140
      %v1231 = vsub.f32 %v625, %v1143
      %v1232 = vsub.f32 %v630, %v1146
      %v1233 = vsub.f32 %v635, %v1149
      %v1234 = vsub.f32 %v640, %v1152
      %v1235 = vsub.f32 %v645, %v1155
      %v1236 = vsub.f32 %v771, %v1158
      %v1237 = vsub.f32 %v776, %v1161
      %v1238 = vsub.f32 %v781, %v1164
      %v1239 = vsub.f32 %v786, %v1167
      %v1240 = vsub.f32 %v791, %v1170
      %v1241 = vsub.f32 %v796, %v1173
      %v1242 = vsub.f32 %v801, %v1176
      %v1243 = vsub.f32 %v806, %v1179
      %v1244 = vsub.f32 %v932, %v1182
      %v1245 = vsub.f32 %v937, %v1185
      %v1246 = vsub.f32 %v942, %v1188
      %v1247 = vsub.f32 %v947, %v1191
      %v1248 = vsub.f32 %v952, %v1194
      %v1249 = vsub.f32 %v957, %v1197
      %v1250 = vsub.f32 %v962, %v1200
      %v1251 = vsub.f32 %v967, %v1203
      %v1252 = vsub.f32 %v1093, %v1206
      %v1253 = vsub.f32 %v1098, %v1209
      %v1254 = vsub.f32 %v1103, %v1212
      %v1255 = vsub.f32 %v1108, %v1215
      %v1256 = vsub.f32 %v1113, %v1218
      %v1257 = vsub.f32 %v1118, %v1221
      %v1258 = vsub.f32 %v1123, %v1224
      %v1259 = vsub.f32 %v1128, %v1227
      %v1260 = vmul.f32 %v1228, 1.442695
      %v1261 = vpow.pop %v1260
      %v1262 = vmul.f32 %v1229, 1.442695
      %v1263 = vpow.pop %v1262
      %v1264 = vmul.f32 %v1230, 1.442695
      %v1265 = vpow.pop %v1264
      %v1266 = vmul.f32 %v1231, 1.442695
      %v1267 = vpow.pop %v1266
      %v1268 = vmul.f32 %v1232, 1.442695
      %v1269 = vpow.pop %v1268
      %v1270 = vmul.f32 %v1233, 1.442695
      %v1271 = vpow.pop %v1270
      %v1272 = vmul.f32 %v1234, 1.442695
      %v1273 = vpow.pop %v1272
      %v1274 = vmul.f32 %v1235, 1.442695
      %v1275 = vpow.pop %v1274
      %v1276 = vmul.f32 %v1236, 1.442695
      %v1277 = vpow.pop %v1276
      %v1278 = vmul.f32 %v1237, 1.442695
      %v1279 = vpow.pop %v1278
      %v1280 = vmul.f32 %v1238, 1.442695
      %v1281 = vpow.pop %v1280
      %v1282 = vmul.f32 %v1239, 1.442695
      %v1283 = vpow.pop %v1282
      %v1284 = vmul.f32 %v1240, 1.442695
      %v1285 = vpow.pop %v1284
      %v1286 = vmul.f32 %v1241, 1.442695
      %v1287 = vpow.pop %v1286
      %v1288 = vmul.f32 %v1242, 1.442695
      %v1289 = vpow.pop %v1288
      %v1290 = vmul.f32 %v1243, 1.442695
      %v1291 = vpow.pop %v1290
      %v1292 = vmul.f32 %v1244, 1.442695
      %v1293 = vpow.pop %v1292
      %v1294 = vmul.f32 %v1245, 1.442695
      %v1295 = vpow.pop %v1294
      %v1296 = vmul.f32 %v1246, 1.442695
      %v1297 = vpow.pop %v1296
      %v1298 = vmul.f32 %v1247, 1.442695
      %v1299 = vpow.pop %v1298
      %v1300 = vmul.f32 %v1248, 1.442695
      %v1301 = vpow.pop %v1300
      %v1302 = vmul.f32 %v1249, 1.442695
      %v1303 = vpow.pop %v1302
      %v1304 = vmul.f32 %v1250, 1.442695
      %v1305 = vpow.pop %v1304
      %v1306 = vmul.f32 %v1251, 1.442695
      %v1307 = vpow.pop %v1306
      %v1308 = vmul.f32 %v1252, 1.442695
      %v1309 = vpow.pop %v1308
      %v1310 = vmul.f32 %v1253, 1.442695
      %v1311 = vpow.pop %v1310
      %v1312 = vmul.f32 %v1254, 1.442695
      %v1313 = vpow.pop %v1312
      %v1314 = vmul.f32 %v1255, 1.442695
      %v1315 = vpow.pop %v1314
      %v1316 = vmul.f32 %v1256, 1.442695
      %v1317 = vpow.pop %v1316
      %v1318 = vmul.f32 %v1257, 1.442695
      %v1319 = vpow.pop %v1318
      %v1320 = vmul.f32 %v1258, 1.442695
      %v1321 = vpow.pop %v1320
      %v1322 = vmul.f32 %v1259, 1.442695
      %v1323 = vpow.pop %v1322
      %v1324 = vsel %vm1131, %v1261, 0.0
      %1325 = vadd.xlane.f32.xlu0 %v1324
      %v1326 = vpop.xlane.xlu0 %1325
      %v1327 = vsel %vm1131, %v1263, 0.0
      %1328 = vadd.xlane.f32.xlu0 %v1327
      %v1329 = vpop.xlane.xlu0 %1328
      %v1330 = vsel %vm1131, %v1265, 0.0
      %1331 = vadd.xlane.f32.xlu0 %v1330
      %v1332 = vpop.xlane.xlu0 %1331
      %v1333 = vsel %vm1131, %v1267, 0.0
      %1334 = vadd.xlane.f32.xlu0 %v1333
      %v1335 = vpop.xlane.xlu0 %1334
      %v1336 = vsel %vm1131, %v1269, 0.0
      %1337 = vadd.xlane.f32.xlu0 %v1336
      %v1338 = vpop.xlane.xlu0 %1337
      %v1339 = vsel %vm1131, %v1271, 0.0
      %1340 = vadd.xlane.f32.xlu0 %v1339
      %v1341 = vpop.xlane.xlu0 %1340
      %v1342 = vsel %vm1131, %v1273, 0.0
      %1343 = vadd.xlane.f32.xlu0 %v1342
      %v1344 = vpop.xlane.xlu0 %1343
      %v1345 = vsel %vm1131, %v1275, 0.0
      %1346 = vadd.xlane.f32.xlu0 %v1345
      %v1347 = vpop.xlane.xlu0 %1346
      %v1348 = vsel %vm1131, %v1277, 0.0
      %1349 = vadd.xlane.f32.xlu0 %v1348
      %v1350 = vpop.xlane.xlu0 %1349
      %v1351 = vsel %vm1131, %v1279, 0.0
      %1352 = vadd.xlane.f32.xlu0 %v1351
      %v1353 = vpop.xlane.xlu0 %1352
      %v1354 = vsel %vm1131, %v1281, 0.0
      %1355 = vadd.xlane.f32.xlu0 %v1354
      %v1356 = vpop.xlane.xlu0 %1355
      %v1357 = vsel %vm1131, %v1283, 0.0
      %1358 = vadd.xlane.f32.xlu0 %v1357
      %v1359 = vpop.xlane.xlu0 %1358
      %v1360 = vsel %vm1131, %v1285, 0.0
      %1361 = vadd.xlane.f32.xlu0 %v1360
      %v1362 = vpop.xlane.xlu0 %1361
      %v1363 = vsel %vm1131, %v1287, 0.0
      %1364 = vadd.xlane.f32.xlu0 %v1363
      %v1365 = vpop.xlane.xlu0 %1364
      %v1366 = vsel %vm1131, %v1289, 0.0
      %1367 = vadd.xlane.f32.xlu0 %v1366
      %v1368 = vpop.xlane.xlu0 %1367
      %v1369 = vsel %vm1131, %v1291, 0.0
      %1370 = vadd.xlane.f32.xlu0 %v1369
      %v1371 = vpop.xlane.xlu0 %1370
      %v1372 = vsel %vm1131, %v1293, 0.0
      %1373 = vadd.xlane.f32.xlu0 %v1372
      %v1374 = vpop.xlane.xlu0 %1373
      %v1375 = vsel %vm1131, %v1295, 0.0
      %1376 = vadd.xlane.f32.xlu0 %v1375
      %v1377 = vpop.xlane.xlu0 %1376
      %v1378 = vsel %vm1131, %v1297, 0.0
      %1379 = vadd.xlane.f32.xlu0 %v1378
      %v1380 = vpop.xlane.xlu0 %1379
      %v1381 = vsel %vm1131, %v1299, 0.0
      %1382 = vadd.xlane.f32.xlu0 %v1381
      %v1383 = vpop.xlane.xlu0 %1382
      %v1384 = vsel %vm1131, %v1301, 0.0
      %1385 = vadd.xlane.f32.xlu0 %v1384
      %v1386 = vpop.xlane.xlu0 %1385
      %v1387 = vsel %vm1131, %v1303, 0.0
      %1388 = vadd.xlane.f32.xlu0 %v1387
      %v1389 = vpop.xlane.xlu0 %1388
      %v1390 = vsel %vm1131, %v1305, 0.0
      %1391 = vadd.xlane.f32.xlu0 %v1390
      %v1392 = vpop.xlane.xlu0 %1391
      %v1393 = vsel %vm1131, %v1307, 0.0
      %1394 = vadd.xlane.f32.xlu0 %v1393
      %v1395 = vpop.xlane.xlu0 %1394
      %v1396 = vsel %vm1131, %v1309, 0.0
      %1397 = vadd.xlane.f32.xlu0 %v1396
      %v1398 = vpop.xlane.xlu0 %1397
      %v1399 = vsel %vm1131, %v1311, 0.0
      %1400 = vadd.xlane.f32.xlu0 %v1399
      %v1401 = vpop.xlane.xlu0 %1400
      %v1402 = vsel %vm1131, %v1313, 0.0
      %1403 = vadd.xlane.f32.xlu0 %v1402
      %v1404 = vpop.xlane.xlu0 %1403
      %v1405 = vsel %vm1131, %v1315, 0.0
      %1406 = vadd.xlane.f32.xlu0 %v1405
      %v1407 = vpop.xlane.xlu0 %1406
      %v1408 = vsel %vm1131, %v1317, 0.0
      %1409 = vadd.xlane.f32.xlu0 %v1408
      %v1410 = vpop.xlane.xlu0 %1409
      %v1411 = vsel %vm1131, %v1319, 0.0
      %1412 = vadd.xlane.f32.xlu0 %v1411
      %v1413 = vpop.xlane.xlu0 %1412
      %v1414 = vsel %vm1131, %v1321, 0.0
      %1415 = vadd.xlane.f32.xlu0 %v1414
      %v1416 = vpop.xlane.xlu0 %1415
      %v1417 = vsel %vm1131, %v1323, 0.0
      %1418 = vadd.xlane.f32.xlu0 %v1417
      %v1419 = vpop.xlane.xlu0 %1418
      %v1420 = vrcp.pop %v1326
      %v1421 = vrcp.pop %v1329
      %v1422 = vrcp.pop %v1332
      %v1423 = vrcp.pop %v1335
      %v1424 = vrcp.pop %v1338
      %v1425 = vrcp.pop %v1341
      %v1426 = vrcp.pop %v1344
      %v1427 = vrcp.pop %v1347
      %v1428 = vrcp.pop %v1350
      %v1429 = vrcp.pop %v1353
      %v1430 = vrcp.pop %v1356
      %v1431 = vrcp.pop %v1359
      %v1432 = vrcp.pop %v1362
      %v1433 = vrcp.pop %v1365
      %v1434 = vrcp.pop %v1368
      %v1435 = vrcp.pop %v1371
      %v1436 = vrcp.pop %v1374
      %v1437 = vrcp.pop %v1377
      %v1438 = vrcp.pop %v1380
      %v1439 = vrcp.pop %v1383
      %v1440 = vrcp.pop %v1386
      %v1441 = vrcp.pop %v1389
      %v1442 = vrcp.pop %v1392
      %v1443 = vrcp.pop %v1395
      %v1444 = vrcp.pop %v1398
      %v1445 = vrcp.pop %v1401
      %v1446 = vrcp.pop %v1404
      %v1447 = vrcp.pop %v1407
      %v1448 = vrcp.pop %v1410
      %v1449 = vrcp.pop %v1413
      %v1450 = vrcp.pop %v1416
      %v1451 = vrcp.pop %v1419
      %v1452 = vmul.f32 %v1326, %v1420
      %v1453 = vmul.f32 %v1329, %v1421
      %v1454 = vmul.f32 %v1332, %v1422
      %v1455 = vmul.f32 %v1335, %v1423
      %v1456 = vmul.f32 %v1338, %v1424
      %v1457 = vmul.f32 %v1341, %v1425
      %v1458 = vmul.f32 %v1344, %v1426
      %v1459 = vmul.f32 %v1347, %v1427
      %v1460 = vmul.f32 %v1350, %v1428
      %v1461 = vmul.f32 %v1353, %v1429
      %v1462 = vmul.f32 %v1356, %v1430
      %v1463 = vmul.f32 %v1359, %v1431
      %v1464 = vmul.f32 %v1362, %v1432
      %v1465 = vmul.f32 %v1365, %v1433
      %v1466 = vmul.f32 %v1368, %v1434
      %v1467 = vmul.f32 %v1371, %v1435
      %v1468 = vmul.f32 %v1374, %v1436
      %v1469 = vmul.f32 %v1377, %v1437
      %v1470 = vmul.f32 %v1380, %v1438
      %v1471 = vmul.f32 %v1383, %v1439
      %v1472 = vmul.f32 %v1386, %v1440
      %v1473 = vmul.f32 %v1389, %v1441
      %v1474 = vmul.f32 %v1392, %v1442
      %v1475 = vmul.f32 %v1395, %v1443
      %v1476 = vmul.f32 %v1398, %v1444
      %v1477 = vmul.f32 %v1401, %v1445
      %v1478 = vmul.f32 %v1404, %v1446
      %v1479 = vmul.f32 %v1407, %v1447
      %v1480 = vmul.f32 %v1410, %v1448
      %v1481 = vmul.f32 %v1413, %v1449
      %v1482 = vmul.f32 %v1416, %v1450
      %v1483 = vmul.f32 %v1419, %v1451
      %v1484 = vsub.f32 2.0, %v1452
      %v1485 = vsub.f32 2.0, %v1453
      %v1486 = vsub.f32 2.0, %v1454
      %v1487 = vsub.f32 2.0, %v1455
      %v1488 = vsub.f32 2.0, %v1456
      %v1489 = vsub.f32 2.0, %v1457
      %v1490 = vsub.f32 2.0, %v1458
      %v1491 = vsub.f32 2.0, %v1459
      %v1492 = vsub.f32 2.0, %v1460
      %v1493 = vsub.f32 2.0, %v1461
      %v1494 = vsub.f32 2.0, %v1462
      %v1495 = vsub.f32 2.0, %v1463
      %v1496 = vsub.f32 2.0, %v1464
      %v1497 = vsub.f32 2.0, %v1465
      %v1498 = vsub.f32 2.0, %v1466
      %v1499 = vsub.f32 2.0, %v1467
      %v1500 = vsub.f32 2.0, %v1468
      %v1501 = vsub.f32 2.0, %v1469
      %v1502 = vsub.f32 2.0, %v1470
      %v1503 = vsub.f32 2.0, %v1471
      %v1504 = vsub.f32 2.0, %v1472
      %v1505 = vsub.f32 2.0, %v1473
      %v1506 = vsub.f32 2.0, %v1474
      %v1507 = vsub.f32 2.0, %v1475
      %v1508 = vsub.f32 2.0, %v1476
      %v1509 = vsub.f32 2.0, %v1477
      %v1510 = vsub.f32 2.0, %v1478
      %v1511 = vsub.f32 2.0, %v1479
      %v1512 = vsub.f32 2.0, %v1480
      %v1513 = vsub.f32 2.0, %v1481
      %v1514 = vsub.f32 2.0, %v1482
      %v1515 = vsub.f32 2.0, %v1483
      %v1516 = vmul.f32 %v1420, %v1484
      %v1517 = vmul.f32 %v1421, %v1485
      %v1518 = vmul.f32 %v1422, %v1486
      %v1519 = vmul.f32 %v1423, %v1487
      %v1520 = vmul.f32 %v1424, %v1488
      %v1521 = vmul.f32 %v1425, %v1489
      %v1522 = vmul.f32 %v1426, %v1490
      %v1523 = vmul.f32 %v1427, %v1491
      %v1524 = vmul.f32 %v1428, %v1492
      %v1525 = vmul.f32 %v1429, %v1493
      %v1526 = vmul.f32 %v1430, %v1494
      %v1527 = vmul.f32 %v1431, %v1495
      %v1528 = vmul.f32 %v1432, %v1496
      %v1529 = vmul.f32 %v1433, %v1497
      %v1530 = vmul.f32 %v1434, %v1498
      %v1531 = vmul.f32 %v1435, %v1499
      %v1532 = vmul.f32 %v1436, %v1500
      %v1533 = vmul.f32 %v1437, %v1501
      %v1534 = vmul.f32 %v1438, %v1502
      %v1535 = vmul.f32 %v1439, %v1503
      %v1536 = vmul.f32 %v1440, %v1504
      %v1537 = vmul.f32 %v1441, %v1505
      %v1538 = vmul.f32 %v1442, %v1506
      %v1539 = vmul.f32 %v1443, %v1507
      %v1540 = vmul.f32 %v1444, %v1508
      %v1541 = vmul.f32 %v1445, %v1509
      %v1542 = vmul.f32 %v1446, %v1510
      %v1543 = vmul.f32 %v1447, %v1511
      %v1544 = vmul.f32 %v1448, %v1512
      %v1545 = vmul.f32 %v1449, %v1513
      %v1546 = vmul.f32 %v1450, %v1514
      %v1547 = vmul.f32 %v1451, %v1515
      %v1548 = vmul.f32 %v1261, %v1516
      %v1549 = vmul.f32 %v1263, %v1517
      %v1550 = vmul.f32 %v1265, %v1518
      %v1551 = vmul.f32 %v1267, %v1519
      %v1552 = vmul.f32 %v1269, %v1520
      %v1553 = vmul.f32 %v1271, %v1521
      %v1554 = vmul.f32 %v1273, %v1522
      %v1555 = vmul.f32 %v1275, %v1523
      %v1556 = vmul.f32 %v1277, %v1524
      %v1557 = vmul.f32 %v1279, %v1525
      %v1558 = vmul.f32 %v1281, %v1526
      %v1559 = vmul.f32 %v1283, %v1527
      %v1560 = vmul.f32 %v1285, %v1528
      %v1561 = vmul.f32 %v1287, %v1529
      %v1562 = vmul.f32 %v1289, %v1530
      %v1563 = vmul.f32 %v1291, %v1531
      %v1564 = vmul.f32 %v1293, %v1532
      %v1565 = vmul.f32 %v1295, %v1533
      %v1566 = vmul.f32 %v1297, %v1534
      %v1567 = vmul.f32 %v1299, %v1535
      %v1568 = vmul.f32 %v1301, %v1536
      %v1569 = vmul.f32 %v1303, %v1537
      %v1570 = vmul.f32 %v1305, %v1538
      %v1571 = vmul.f32 %v1307, %v1539
      %v1572 = vmul.f32 %v1309, %v1540
      %v1573 = vmul.f32 %v1311, %v1541
      %v1574 = vmul.f32 %v1313, %v1542
      %v1575 = vmul.f32 %v1315, %v1543
      %v1576 = vmul.f32 %v1317, %v1544
      %v1577 = vmul.f32 %v1319, %v1545
      %v1578 = vmul.f32 %v1321, %v1546
      %v1579 = vmul.f32 %v1323, %v1547
      %1580 = vrot.lane.b32.xlu0 %v336, 64
      %v1581 = vpop.permute.xlu0 %1580
      %1582 = vrot.lane.b32.xlu0 %v341, 64
      %v1583 = vpop.permute.xlu0 %1582
      %1584 = vrot.lane.b32.xlu0 %v346, 64
      %v1585 = vpop.permute.xlu0 %1584
      %1586 = vrot.lane.b32.xlu0 %v351, 64
      %v1587 = vpop.permute.xlu0 %1586
      %1588 = vrot.lane.b32.xlu0 %v356, 64
      %v1589 = vpop.permute.xlu0 %1588
      %1590 = vrot.lane.b32.xlu0 %v361, 64
      %v1591 = vpop.permute.xlu0 %1590
      %1592 = vrot.lane.b32.xlu0 %v366, 64
      %v1593 = vpop.permute.xlu0 %1592
      %1594 = vrot.lane.b32.xlu0 %v371, 64
      %v1595 = vpop.permute.xlu0 %1594
      %v1605 = vsel %vm1131, %v1548, 0
      %v1608 = vsel %vm1131, %v1549, 0
      %v1611 = vsel %vm1131, %v1550, 0
      %v1614 = vsel %vm1131, %v1551, 0
      %v1617 = vsel %vm1131, %v1552, 0
      %v1620 = vsel %vm1131, %v1553, 0
      %v1623 = vsel %vm1131, %v1554, 0
      %v1626 = vsel %vm1131, %v1555, 0
      %1628 = vmatprep.subr.mxu0 0.0
      %1629 = vmatpush1.msra.mxu0 %v1581
      %1630 = vmatprep.subr.mxu0 0.0
      %1631 = vmatpush1.msra.mxu0 %v1583
      %1632 = vmatprep.subr.mxu0 0.0
      %1633 = vmatpush1.msra.mxu0 %v1585
      %1634 = vmatprep.subr.mxu0 0.0
      %1635 = vmatpush1.msra.mxu0 %v1587
      %1636 = vmatprep.subr.mxu0 0.0
      %1637 = vmatpush1.msra.mxu0 %v1589
      %1638 = vmatprep.subr.mxu0 0.0
      %1639 = vmatpush1.msra.mxu0 %v1591
      %1640 = vmatprep.subr.mxu0 0.0
      %1641 = vmatpush1.msra.mxu0 %v1593
      %1642 = vmatprep.subr.mxu0 0.0
      %1643 = vmatpush1.msra.mxu0 %v1595
      %1644 = vmatprep.subr.mxu0 0.0
      %1645 = vmatpush1.msra.mxu0 0.0
      %1646 = vmatprep.subr.mxu0 0.0
      %1647 = vmatpush1.msra.mxu0 0.0
      %1648 = vmatprep.subr.mxu0 0.0
      %1649 = vmatpush1.msra.mxu0 0.0
      %1650 = vmatprep.subr.mxu0 0.0
      %1651 = vmatpush1.msra.mxu0 0.0
      %1652 = vmatprep.subr.mxu0 0.0
      %1653 = vmatpush1.msra.mxu0 0.0
      %1654 = vmatprep.subr.mxu0 0.0
      %1655 = vmatpush1.msra.mxu0 0.0
      %1656 = vmatprep.subr.mxu0 0.0
      %1657 = vmatpush1.msra.mxu0 0.0
      %1658 = vmatprep.subr.mxu0 0.0
      %1659 = vmatpush1.msra.mxu0 0.0
      %1660 = vmatprep.subr.mxu0 0.0
      %1661 = vmatpush1.msra.mxu0 0.0
      %1662 = vmatprep.subr.mxu0 0.0
      %1663 = vmatpush1.msra.mxu0 0.0
      %1664 = vmatprep.subr.mxu0 0.0
      %1665 = vmatpush1.msra.mxu0 0.0
      %1666 = vmatprep.subr.mxu0 0.0
      %1667 = vmatpush1.msra.mxu0 0.0
      %1668 = vmatprep.subr.mxu0 0.0
      %1669 = vmatpush1.msra.mxu0 0.0
      %1670 = vmatprep.subr.mxu0 0.0
      %1671 = vmatpush1.msra.mxu0 0.0
      %1672 = vmatprep.subr.mxu0 0.0
      %1673 = vmatpush1.msra.mxu0 0.0
      %1674 = vmatprep.subr.mxu0 0.0
      %1675 = vmatpush1.msra.mxu0 0.0
      %1676 = vmatprep.subr.mxu0 0.0
      %1677 = vmatpush1.msra.mxu0 0.0
      %1678 = vmatprep.subr.mxu0 0.0
      %1679 = vmatpush1.msra.mxu0 0.0
      %1680 = vmatprep.subr.mxu0 0.0
      %1681 = vmatpush1.msra.mxu0 0.0
      %1682 = vmatprep.subr.mxu0 0.0
      %1683 = vmatpush1.msra.mxu0 0.0
      %1684 = vmatprep.subr.mxu0 0.0
      %1685 = vmatpush1.msra.mxu0 0.0
      %1686 = vmatprep.subr.mxu0 0.0
      %1687 = vmatpush1.msra.mxu0 0.0
      %1688 = vmatprep.subr.mxu0 0.0
      %1689 = vmatpush1.msra.mxu0 0.0
      %1690 = vmatprep.subr.mxu0 0.0
      %1691 = vmatpush1.msra.mxu0 0.0
      %1692 = vmatprep.mubr.f32.mxu0 0.0
      %1693 = vmatmul.mubr.f32.gmra.mrb[0].mxu0 %v1605
      %v1694 = vpop.f32.mrb[0].mxu0
      %v1695 = vadd.f32 0.0, %v1694
      %v1696 = vpop.f32.mrb[0].mxu0
      %1697 = vmatprep.mubr.f32.mxu0 0.0
      %1698 = vmatmul.mubr.f32.gmra.mrb[0].mxu0 %v1608
      %v1699 = vpop.f32.mrb[0].mxu0
      %v1700 = vadd.f32 0.0, %v1699
      %v1701 = vpop.f32.mrb[0].mxu0
      %1702 = vmatprep.mubr.f32.mxu0 0.0
      %1703 = vmatmul.mubr.f32.gmra.mrb[0].mxu0 %v1611
      %v1704 = vpop.f32.mrb[0].mxu0
      %v1705 = vadd.f32 0.0, %v1704
      %v1706 = vpop.f32.mrb[0].mxu0
      %1707 = vmatprep.mubr.f32.mxu0 0.0
      %1708 = vmatmul.mubr.f32.gmra.mrb[0].mxu0 %v1614
      %v1709 = vpop.f32.mrb[0].mxu0
      %v1710 = vadd.f32 0.0, %v1709
      %v1711 = vpop.f32.mrb[0].mxu0
      %1712 = vmatprep.mubr.f32.mxu0 0.0
      %1713 = vmatmul.mubr.f32.gmra.mrb[0].mxu0 %v1617
      %v1714 = vpop.f32.mrb[0].mxu0
      %v1715 = vadd.f32 0.0, %v1714
      %v1716 = vpop.f32.mrb[0].mxu0
      %1717 = vmatprep.mubr.f32.mxu0 0.0
      %1718 = vmatmul.mubr.f32.gmra.mrb[0].mxu0 %v1620
      %v1719 = vpop.f32.mrb[0].mxu0
      %v1720 = vadd.f32 0.0, %v1719
      %v1721 = vpop.f32.mrb[0].mxu0
      %1722 = vmatprep.mubr.f32.mxu0 0.0
      %1723 = vmatmul.mubr.f32.gmra.mrb[0].mxu0 %v1623
      %v1724 = vpop.f32.mrb[0].mxu0
      %v1725 = vadd.f32 0.0, %v1724
      %v1726 = vpop.f32.mrb[0].mxu0
      %1727 = vmatprep.mubr.f32.mxu0 0.0
      %1728 = vmatmul.mubr.f32.gmra.mrb[0].mxu0 %v1626
      %v1729 = vpop.f32.mrb[0].mxu0
      %v1730 = vadd.f32 0.0, %v1729
      %v1731 = vpop.f32.mrb[0].mxu0
      %1732 = vdwg.mxu0
      %1733 = vrot.lane.b32.xlu0 %v383, 64
      %v1734 = vpop.permute.xlu0 %1733
      %1735 = vrot.lane.b32.xlu0 %v385, 64
      %v1736 = vpop.permute.xlu0 %1735
      %1737 = vrot.lane.b32.xlu0 %v387, 64
      %v1738 = vpop.permute.xlu0 %1737
      %1739 = vrot.lane.b32.xlu0 %v389, 64
      %v1740 = vpop.permute.xlu0 %1739
      %1741 = vrot.lane.b32.xlu0 %v391, 64
      %v1742 = vpop.permute.xlu0 %1741
      %1743 = vrot.lane.b32.xlu0 %v393, 64
      %v1744 = vpop.permute.xlu0 %1743
      %1745 = vrot.lane.b32.xlu0 %v395, 64
      %v1746 = vpop.permute.xlu0 %1745
      %1747 = vrot.lane.b32.xlu0 %v397, 64
      %v1748 = vpop.permute.xlu0 %1747
      %v1758 = vsel %vm1131, %v1556, 0
      %v1761 = vsel %vm1131, %v1557, 0
      %v1764 = vsel %vm1131, %v1558, 0
      %v1767 = vsel %vm1131, %v1559, 0
      %v1770 = vsel %vm1131, %v1560, 0
      %v1773 = vsel %vm1131, %v1561, 0
      %v1776 = vsel %vm1131, %v1562, 0
      %v1779 = vsel %vm1131, %v1563, 0
      %1781 = vmatprep.subr.mxu0 0.0
      %1782 = vmatpush1.msra.mxu0 %v1734
      %1783 = vmatprep.subr.mxu0 0.0
      %1784 = vmatpush1.msra.mxu0 %v1736
      %1785 = vmatprep.subr.mxu0 0.0
      %1786 = vmatpush1.msra.mxu0 %v1738
      %1787 = vmatprep.subr.mxu0 0.0
      %1788 = vmatpush1.msra.mxu0 %v1740
      %1789 = vmatprep.subr.mxu0 0.0
      %1790 = vmatpush1.msra.mxu0 %v1742
      %1791 = vmatprep.subr.mxu0 0.0
      %1792 = vmatpush1.msra.mxu0 %v1744
      %1793 = vmatprep.subr.mxu0 0.0
      %1794 = vmatpush1.msra.mxu0 %v1746
      %1795 = vmatprep.subr.mxu0 0.0
      %1796 = vmatpush1.msra.mxu0 %v1748
      %1797 = vmatprep.subr.mxu0 0.0
      %1798 = vmatpush1.msra.mxu0 0.0
      %1799 = vmatprep.subr.mxu0 0.0
      %1800 = vmatpush1.msra.mxu0 0.0
      %1801 = vmatprep.subr.mxu0 0.0
      %1802 = vmatpush1.msra.mxu0 0.0
      %1803 = vmatprep.subr.mxu0 0.0
      %1804 = vmatpush1.msra.mxu0 0.0
      %1805 = vmatprep.subr.mxu0 0.0
      %1806 = vmatpush1.msra.mxu0 0.0
      %1807 = vmatprep.subr.mxu0 0.0
      %1808 = vmatpush1.msra.mxu0 0.0
      %1809 = vmatprep.subr.mxu0 0.0
      %1810 = vmatpush1.msra.mxu0 0.0
      %1811 = vmatprep.subr.mxu0 0.0
      %1812 = vmatpush1.msra.mxu0 0.0
      %1813 = vmatprep.subr.mxu0 0.0
      %1814 = vmatpush1.msra.mxu0 0.0
      %1815 = vmatprep.subr.mxu0 0.0
      %1816 = vmatpush1.msra.mxu0 0.0
      %1817 = vmatprep.subr.mxu0 0.0
      %1818 = vmatpush1.msra.mxu0 0.0
      %1819 = vmatprep.subr.mxu0 0.0
      %1820 = vmatpush1.msra.mxu0 0.0
      %1821 = vmatprep.subr.mxu0 0.0
      %1822 = vmatpush1.msra.mxu0 0.0
      %1823 = vmatprep.subr.mxu0 0.0
      %1824 = vmatpush1.msra.mxu0 0.0
      %1825 = vmatprep.subr.mxu0 0.0
      %1826 = vmatpush1.msra.mxu0 0.0
      %1827 = vmatprep.subr.mxu0 0.0
      %1828 = vmatpush1.msra.mxu0 0.0
      %1829 = vmatprep.subr.mxu0 0.0
      %1830 = vmatpush1.msra.mxu0 0.0
      %1831 = vmatprep.subr.mxu0 0.0
      %1832 = vmatpush1.msra.mxu0 0.0
      %1833 = vmatprep.subr.mxu0 0.0
      %1834 = vmatpush1.msra.mxu0 0.0
      %1835 = vmatprep.subr.mxu0 0.0
      %1836 = vmatpush1.msra.mxu0 0.0
      %1837 = vmatprep.subr.mxu0 0.0
      %1838 = vmatpush1.msra.mxu0 0.0
      %1839 = vmatprep.subr.mxu0 0.0
      %1840 = vmatpush1.msra.mxu0 0.0
      %1841 = vmatprep.subr.mxu0 0.0
      %1842 = vmatpush1.msra.mxu0 0.0
      %1843 = vmatprep.subr.mxu0 0.0
      %1844 = vmatpush1.msra.mxu0 0.0
      %1845 = vmatprep.mubr.f32.mxu0 0.0
      %1846 = vmatmul.mubr.f32.gmra.mrb[0].mxu0 %v1758
      %v1847 = vpop.f32.mrb[0].mxu0
      %v1848 = vadd.f32 0.0, %v1847
      %v1849 = vpop.f32.mrb[0].mxu0
      %1850 = vmatprep.mubr.f32.mxu0 0.0
      %1851 = vmatmul.mubr.f32.gmra.mrb[0].mxu0 %v1761
      %v1852 = vpop.f32.mrb[0].mxu0
      %v1853 = vadd.f32 0.0, %v1852
      %v1854 = vpop.f32.mrb[0].mxu0
      %1855 = vmatprep.mubr.f32.mxu0 0.0
      %1856 = vmatmul.mubr.f32.gmra.mrb[0].mxu0 %v1764
      %v1857 = vpop.f32.mrb[0].mxu0
      %v1858 = vadd.f32 0.0, %v1857
      %v1859 = vpop.f32.mrb[0].mxu0
      %1860 = vmatprep.mubr.f32.mxu0 0.0
      %1861 = vmatmul.mubr.f32.gmra.mrb[0].mxu0 %v1767
      %v1862 = vpop.f32.mrb[0].mxu0
      %v1863 = vadd.f32 0.0, %v1862
      %v1864 = vpop.f32.mrb[0].mxu0
      %1865 = vmatprep.mubr.f32.mxu0 0.0
      %1866 = vmatmul.mubr.f32.gmra.mrb[0].mxu0 %v1770
      %v1867 = vpop.f32.mrb[0].mxu0
      %v1868 = vadd.f32 0.0, %v1867
      %v1869 = vpop.f32.mrb[0].mxu0
      %1870 = vmatprep.mubr.f32.mxu0 0.0
      %1871 = vmatmul.mubr.f32.gmra.mrb[0].mxu0 %v1773
      %v1872 = vpop.f32.mrb[0].mxu0
      %v1873 = vadd.f32 0.0, %v1872
      %v1874 = vpop.f32.mrb[0].mxu0
      %1875 = vmatprep.mubr.f32.mxu0 0.0
      %1876 = vmatmul.mubr.f32.gmra.mrb[0].mxu0 %v1776
      %v1877 = vpop.f32.mrb[0].mxu0
      %v1878 = vadd.f32 0.0, %v1877
      %v1879 = vpop.f32.mrb[0].mxu0
      %1880 = vmatprep.mubr.f32.mxu0 0.0
      %1881 = vmatmul.mubr.f32.gmra.mrb[0].mxu0 %v1779
      %v1882 = vpop.f32.mrb[0].mxu0
      %v1883 = vadd.f32 0.0, %v1882
      %v1884 = vpop.f32.mrb[0].mxu0
      %1885 = vdwg.mxu0
      %1886 = vrot.lane.b32.xlu0 %v407, 64
      %v1887 = vpop.permute.xlu0 %1886
      %1888 = vrot.lane.b32.xlu0 %v409, 64
      %v1889 = vpop.permute.xlu0 %1888
      %1890 = vrot.lane.b32.xlu0 %v411, 64
      %v1891 = vpop.permute.xlu0 %1890
      %1892 = vrot.lane.b32.xlu0 %v413, 64
      %v1893 = vpop.permute.xlu0 %1892
      %1894 = vrot.lane.b32.xlu0 %v415, 64
      %v1895 = vpop.permute.xlu0 %1894
      %1896 = vrot.lane.b32.xlu0 %v417, 64
      %v1897 = vpop.permute.xlu0 %1896
      %1898 = vrot.lane.b32.xlu0 %v419, 64
      %v1899 = vpop.permute.xlu0 %1898
      %1900 = vrot.lane.b32.xlu0 %v421, 64
      %v1901 = vpop.permute.xlu0 %1900
      %v1911 = vsel %vm1131, %v1564, 0
      %v1914 = vsel %vm1131, %v1565, 0
      %v1917 = vsel %vm1131, %v1566, 0
      %v1920 = vsel %vm1131, %v1567, 0
      %v1923 = vsel %vm1131, %v1568, 0
      %v1926 = vsel %vm1131, %v1569, 0
      %v1929 = vsel %vm1131, %v1570, 0
      %v1932 = vsel %vm1131, %v1571, 0
      %1934 = vmatprep.subr.mxu0 0.0
      %1935 = vmatpush1.msra.mxu0 %v1887
      %1936 = vmatprep.subr.mxu0 0.0
      %1937 = vmatpush1.msra.mxu0 %v1889
      %1938 = vmatprep.subr.mxu0 0.0
      %1939 = vmatpush1.msra.mxu0 %v1891
      %1940 = vmatprep.subr.mxu0 0.0
      %1941 = vmatpush1.msra.mxu0 %v1893
      %1942 = vmatprep.subr.mxu0 0.0
      %1943 = vmatpush1.msra.mxu0 %v1895
      %1944 = vmatprep.subr.mxu0 0.0
      %1945 = vmatpush1.msra.mxu0 %v1897
      %1946 = vmatprep.subr.mxu0 0.0
      %1947 = vmatpush1.msra.mxu0 %v1899
      %1948 = vmatprep.subr.mxu0 0.0
      %1949 = vmatpush1.msra.mxu0 %v1901
      %1950 = vmatprep.subr.mxu0 0.0
      %1951 = vmatpush1.msra.mxu0 0.0
      %1952 = vmatprep.subr.mxu0 0.0
      %1953 = vmatpush1.msra.mxu0 0.0
      %1954 = vmatprep.subr.mxu0 0.0
      %1955 = vmatpush1.msra.mxu0 0.0
      %1956 = vmatprep.subr.mxu0 0.0
      %1957 = vmatpush1.msra.mxu0 0.0
      %1958 = vmatprep.subr.mxu0 0.0
      %1959 = vmatpush1.msra.mxu0 0.0
      %1960 = vmatprep.subr.mxu0 0.0
      %1961 = vmatpush1.msra.mxu0 0.0
      %1962 = vmatprep.subr.mxu0 0.0
      %1963 = vmatpush1.msra.mxu0 0.0
      %1964 = vmatprep.subr.mxu0 0.0
      %1965 = vmatpush1.msra.mxu0 0.0
      %1966 = vmatprep.subr.mxu0 0.0
      %1967 = vmatpush1.msra.mxu0 0.0
      %1968 = vmatprep.subr.mxu0 0.0
      %1969 = vmatpush1.msra.mxu0 0.0
      %1970 = vmatprep.subr.mxu0 0.0
      %1971 = vmatpush1.msra.mxu0 0.0
      %1972 = vmatprep.subr.mxu0 0.0
      %1973 = vmatpush1.msra.mxu0 0.0
      %1974 = vmatprep.subr.mxu0 0.0
      %1975 = vmatpush1.msra.mxu0 0.0
      %1976 = vmatprep.subr.mxu0 0.0
      %1977 = vmatpush1.msra.mxu0 0.0
      %1978 = vmatprep.subr.mxu0 0.0
      %1979 = vmatpush1.msra.mxu0 0.0
      %1980 = vmatprep.subr.mxu0 0.0
      %1981 = vmatpush1.msra.mxu0 0.0
      %1982 = vmatprep.subr.mxu0 0.0
      %1983 = vmatpush1.msra.mxu0 0.0
      %1984 = vmatprep.subr.mxu0 0.0
      %1985 = vmatpush1.msra.mxu0 0.0
      %1986 = vmatprep.subr.mxu0 0.0
      %1987 = vmatpush1.msra.mxu0 0.0
      %1988 = vmatprep.subr.mxu0 0.0
      %1989 = vmatpush1.msra.mxu0 0.0
      %1990 = vmatprep.subr.mxu0 0.0
      %1991 = vmatpush1.msra.mxu0 0.0
      %1992 = vmatprep.subr.mxu0 0.0
      %1993 = vmatpush1.msra.mxu0 0.0
      %1994 = vmatprep.subr.mxu0 0.0
      %1995 = vmatpush1.msra.mxu0 0.0
      %1996 = vmatprep.subr.mxu0 0.0
      %1997 = vmatpush1.msra.mxu0 0.0
      %1998 = vmatprep.mubr.f32.mxu0 0.0
      %1999 = vmatmul.mubr.f32.gmra.mrb[0].mxu0 %v1911
      %v2000 = vpop.f32.mrb[0].mxu0
      %v2001 = vadd.f32 0.0, %v2000
      %v2002 = vpop.f32.mrb[0].mxu0
      %2003 = vmatprep.mubr.f32.mxu0 0.0
      %2004 = vmatmul.mubr.f32.gmra.mrb[0].mxu0 %v1914
      %v2005 = vpop.f32.mrb[0].mxu0
      %v2006 = vadd.f32 0.0, %v2005
      %v2007 = vpop.f32.mrb[0].mxu0
      %2008 = vmatprep.mubr.f32.mxu0 0.0
      %2009 = vmatmul.mubr.f32.gmra.mrb[0].mxu0 %v1917
      %v2010 = vpop.f32.mrb[0].mxu0
      %v2011 = vadd.f32 0.0, %v2010
      %v2012 = vpop.f32.mrb[0].mxu0
      %2013 = vmatprep.mubr.f32.mxu0 0.0
      %2014 = vmatmul.mubr.f32.gmra.mrb[0].mxu0 %v1920
      %v2015 = vpop.f32.mrb[0].mxu0
      %v2016 = vadd.f32 0.0, %v2015
      %v2017 = vpop.f32.mrb[0].mxu0
      %2018 = vmatprep.mubr.f32.mxu0 0.0
      %2019 = vmatmul.mubr.f32.gmra.mrb[0].mxu0 %v1923
      %v2020 = vpop.f32.mrb[0].mxu0
      %v2021 = vadd.f32 0.0, %v2020
      %v2022 = vpop.f32.mrb[0].mxu0
      %2023 = vmatprep.mubr.f32.mxu0 0.0
      %2024 = vmatmul.mubr.f32.gmra.mrb[0].mxu0 %v1926
      %v2025 = vpop.f32.mrb[0].mxu0
      %v2026 = vadd.f32 0.0, %v2025
      %v2027 = vpop.f32.mrb[0].mxu0
      %2028 = vmatprep.mubr.f32.mxu0 0.0
      %2029 = vmatmul.mubr.f32.gmra.mrb[0].mxu0 %v1929
      %v2030 = vpop.f32.mrb[0].mxu0
      %v2031 = vadd.f32 0.0, %v2030
      %v2032 = vpop.f32.mrb[0].mxu0
      %2033 = vmatprep.mubr.f32.mxu0 0.0
      %2034 = vmatmul.mubr.f32.gmra.mrb[0].mxu0 %v1932
      %v2035 = vpop.f32.mrb[0].mxu0
      %v2036 = vadd.f32 0.0, %v2035
      %v2037 = vpop.f32.mrb[0].mxu0
      %2038 = vdwg.mxu0
      %2039 = vrot.lane.b32.xlu0 %v431, 64
      %v2040 = vpop.permute.xlu0 %2039
      %2041 = vrot.lane.b32.xlu0 %v433, 64
      %v2042 = vpop.permute.xlu0 %2041
      %2043 = vrot.lane.b32.xlu0 %v435, 64
      %v2044 = vpop.permute.xlu0 %2043
      %2045 = vrot.lane.b32.xlu0 %v437, 64
      %v2046 = vpop.permute.xlu0 %2045
      %2047 = vrot.lane.b32.xlu0 %v439, 64
      %v2048 = vpop.permute.xlu0 %2047
      %2049 = vrot.lane.b32.xlu0 %v441, 64
      %v2050 = vpop.permute.xlu0 %2049
      %2051 = vrot.lane.b32.xlu0 %v443, 64
      %v2052 = vpop.permute.xlu0 %2051
      %2053 = vrot.lane.b32.xlu0 %v445, 64
      %v2054 = vpop.permute.xlu0 %2053
      %v2064 = vsel %vm1131, %v1572, 0
      %v2067 = vsel %vm1131, %v1573, 0
      %v2070 = vsel %vm1131, %v1574, 0
      %v2073 = vsel %vm1131, %v1575, 0
      %v2076 = vsel %vm1131, %v1576, 0
      %v2079 = vsel %vm1131, %v1577, 0
      %v2082 = vsel %vm1131, %v1578, 0
      %v2085 = vsel %vm1131, %v1579, 0
      %2087 = vmatprep.subr.mxu0 0.0
      %2088 = vmatpush1.msra.mxu0 %v2040
      %2089 = vmatprep.subr.mxu0 0.0
      %2090 = vmatpush1.msra.mxu0 %v2042
      %2091 = vmatprep.subr.mxu0 0.0
      %2092 = vmatpush1.msra.mxu0 %v2044
      %2093 = vmatprep.subr.mxu0 0.0
      %2094 = vmatpush1.msra.mxu0 %v2046
      %2095 = vmatprep.subr.mxu0 0.0
      %2096 = vmatpush1.msra.mxu0 %v2048
      %2097 = vmatprep.subr.mxu0 0.0
      %2098 = vmatpush1.msra.mxu0 %v2050
      %2099 = vmatprep.subr.mxu0 0.0
      %2100 = vmatpush1.msra.mxu0 %v2052
      %2101 = vmatprep.subr.mxu0 0.0
      %2102 = vmatpush1.msra.mxu0 %v2054
      %2103 = vmatprep.subr.mxu0 0.0
      %2104 = vmatpush1.msra.mxu0 0.0
      %2105 = vmatprep.subr.mxu0 0.0
      %2106 = vmatpush1.msra.mxu0 0.0
      %2107 = vmatprep.subr.mxu0 0.0
      %2108 = vmatpush1.msra.mxu0 0.0
      %2109 = vmatprep.subr.mxu0 0.0
      %2110 = vmatpush1.msra.mxu0 0.0
      %2111 = vmatprep.subr.mxu0 0.0
      %2112 = vmatpush1.msra.mxu0 0.0
      %2113 = vmatprep.subr.mxu0 0.0
      %2114 = vmatpush1.msra.mxu0 0.0
      %2115 = vmatprep.subr.mxu0 0.0
      %2116 = vmatpush1.msra.mxu0 0.0
      %2117 = vmatprep.subr.mxu0 0.0
      %2118 = vmatpush1.msra.mxu0 0.0
      %2119 = vmatprep.subr.mxu0 0.0
      %2120 = vmatpush1.msra.mxu0 0.0
      %2121 = vmatprep.subr.mxu0 0.0
      %2122 = vmatpush1.msra.mxu0 0.0
      %2123 = vmatprep.subr.mxu0 0.0
      %2124 = vmatpush1.msra.mxu0 0.0
      %2125 = vmatprep.subr.mxu0 0.0
      %2126 = vmatpush1.msra.mxu0 0.0
      %2127 = vmatprep.subr.mxu0 0.0
      %2128 = vmatpush1.msra.mxu0 0.0
      %2129 = vmatprep.subr.mxu0 0.0
      %2130 = vmatpush1.msra.mxu0 0.0
      %2131 = vmatprep.subr.mxu0 0.0
      %2132 = vmatpush1.msra.mxu0 0.0
      %2133 = vmatprep.subr.mxu0 0.0
      %2134 = vmatpush1.msra.mxu0 0.0
      %2135 = vmatprep.subr.mxu0 0.0
      %2136 = vmatpush1.msra.mxu0 0.0
      %2137 = vmatprep.subr.mxu0 0.0
      %2138 = vmatpush1.msra.mxu0 0.0
      %2139 = vmatprep.subr.mxu0 0.0
      %2140 = vmatpush1.msra.mxu0 0.0
      %2141 = vmatprep.subr.mxu0 0.0
      %2142 = vmatpush1.msra.mxu0 0.0
      %2143 = vmatprep.subr.mxu0 0.0
      %2144 = vmatpush1.msra.mxu0 0.0
      %2145 = vmatprep.subr.mxu0 0.0
      %2146 = vmatpush1.msra.mxu0 0.0
      %2147 = vmatprep.subr.mxu0 0.0
      %2148 = vmatpush1.msra.mxu0 0.0
      %2149 = vmatprep.subr.mxu0 0.0
      %2150 = vmatpush1.msra.mxu0 0.0
      %2151 = vmatprep.mubr.f32.mxu0 0.0
      %2152 = vmatmul.mubr.f32.gmra.mrb[0].mxu0 %v2064
      %v2153 = vpop.f32.mrb[0].mxu0
      %v2154 = vadd.f32 0.0, %v2153
      %v2155 = vpop.f32.mrb[0].mxu0
      %2156 = vmatprep.mubr.f32.mxu0 0.0
      %2157 = vmatmul.mubr.f32.gmra.mrb[0].mxu0 %v2067
      %v2158 = vpop.f32.mrb[0].mxu0
      %v2159 = vadd.f32 0.0, %v2158
      %v2160 = vpop.f32.mrb[0].mxu0
      %2161 = vmatprep.mubr.f32.mxu0 0.0
      %2162 = vmatmul.mubr.f32.gmra.mrb[0].mxu0 %v2070
      %v2163 = vpop.f32.mrb[0].mxu0
      %v2164 = vadd.f32 0.0, %v2163
      %v2165 = vpop.f32.mrb[0].mxu0
      %2166 = vmatprep.mubr.f32.mxu0 0.0
      %2167 = vmatmul.mubr.f32.gmra.mrb[0].mxu0 %v2073
      %v2168 = vpop.f32.mrb[0].mxu0
      %v2169 = vadd.f32 0.0, %v2168
      %v2170 = vpop.f32.mrb[0].mxu0
      %2171 = vmatprep.mubr.f32.mxu0 0.0
      %2172 = vmatmul.mubr.f32.gmra.mrb[0].mxu0 %v2076
      %v2173 = vpop.f32.mrb[0].mxu0
      %v2174 = vadd.f32 0.0, %v2173
      %v2175 = vpop.f32.mrb[0].mxu0
      %2176 = vmatprep.mubr.f32.mxu0 0.0
      %2177 = vmatmul.mubr.f32.gmra.mrb[0].mxu0 %v2079
      %v2178 = vpop.f32.mrb[0].mxu0
      %v2179 = vadd.f32 0.0, %v2178
      %v2180 = vpop.f32.mrb[0].mxu0
      %2181 = vmatprep.mubr.f32.mxu0 0.0
      %2182 = vmatmul.mubr.f32.gmra.mrb[0].mxu0 %v2082
      %v2183 = vpop.f32.mrb[0].mxu0
      %v2184 = vadd.f32 0.0, %v2183
      %v2185 = vpop.f32.mrb[0].mxu0
      %2186 = vmatprep.mubr.f32.mxu0 0.0
      %2187 = vmatmul.mubr.f32.gmra.mrb[0].mxu0 %v2085
      %v2188 = vpop.f32.mrb[0].mxu0
      %v2189 = vadd.f32 0.0, %v2188
      %v2190 = vpop.f32.mrb[0].mxu0
      %2191 = vdwg.mxu0
      %v2192 = vld [vmem:[%s3] sm:$0xff]
      %v2193 = vld [vmem:[%s3 + $0x8] sm:$0xff]
      %v2194 = vld [vmem:[%s3 + $0x10] sm:$0xff]
      %v2195 = vld [vmem:[%s3 + $0x18] sm:$0xff]
      %v2197 = vsel %vm502, %v1695, 0
      %v2200 = vsel %vm502, %v1700, 0
      %v2203 = vsel %vm502, %v1705, 0
      %v2206 = vsel %vm502, %v1710, 0
      %v2209 = vsel %vm502, %v1715, 0
      %v2212 = vsel %vm502, %v1720, 0
      %v2215 = vsel %vm502, %v1725, 0
      %v2218 = vsel %vm502, %v1730, 0
      %2220 = vmatprep.subr.mxu0 0.0
      %2221 = vmatpush1.msra.mxu0 %v2192
      %2222 = vmatprep.subr.mxu0 0.0
      %2223 = vmatpush1.msra.mxu0 0.0
      %2224 = vmatprep.subr.mxu0 0.0
      %2225 = vmatpush1.msra.mxu0 0.0
      %2226 = vmatprep.subr.mxu0 0.0
      %2227 = vmatpush1.msra.mxu0 0.0
      %2228 = vmatprep.subr.mxu0 0.0
      %2229 = vmatpush1.msra.mxu0 0.0
      %2230 = vmatprep.subr.mxu0 0.0
      %2231 = vmatpush1.msra.mxu0 0.0
      %2232 = vmatprep.subr.mxu0 0.0
      %2233 = vmatpush1.msra.mxu0 0.0
      %2234 = vmatprep.subr.mxu0 0.0
      %2235 = vmatpush1.msra.mxu0 0.0
      %2236 = vmatprep.subr.mxu0 0.0
      %2237 = vmatpush1.msra.mxu0 0.0
      %2238 = vmatprep.subr.mxu0 0.0
      %2239 = vmatpush1.msra.mxu0 0.0
      %2240 = vmatprep.subr.mxu0 0.0
      %2241 = vmatpush1.msra.mxu0 0.0
      %2242 = vmatprep.subr.mxu0 0.0
      %2243 = vmatpush1.msra.mxu0 0.0
      %2244 = vmatprep.subr.mxu0 0.0
      %2245 = vmatpush1.msra.mxu0 0.0
      %2246 = vmatprep.subr.mxu0 0.0
      %2247 = vmatpush1.msra.mxu0 0.0
      %2248 = vmatprep.subr.mxu0 0.0
      %2249 = vmatpush1.msra.mxu0 0.0
      %2250 = vmatprep.subr.mxu0 0.0
      %2251 = vmatpush1.msra.mxu0 0.0
      %2252 = vmatprep.subr.mxu0 0.0
      %2253 = vmatpush1.msra.mxu0 0.0
      %2254 = vmatprep.subr.mxu0 0.0
      %2255 = vmatpush1.msra.mxu0 0.0
      %2256 = vmatprep.subr.mxu0 0.0
      %2257 = vmatpush1.msra.mxu0 0.0
      %2258 = vmatprep.subr.mxu0 0.0
      %2259 = vmatpush1.msra.mxu0 0.0
      %2260 = vmatprep.subr.mxu0 0.0
      %2261 = vmatpush1.msra.mxu0 0.0
      %2262 = vmatprep.subr.mxu0 0.0
      %2263 = vmatpush1.msra.mxu0 0.0
      %2264 = vmatprep.subr.mxu0 0.0
      %2265 = vmatpush1.msra.mxu0 0.0
      %2266 = vmatprep.subr.mxu0 0.0
      %2267 = vmatpush1.msra.mxu0 0.0
      %2268 = vmatprep.subr.mxu0 0.0
      %2269 = vmatpush1.msra.mxu0 0.0
      %2270 = vmatprep.subr.mxu0 0.0
      %2271 = vmatpush1.msra.mxu0 0.0
      %2272 = vmatprep.subr.mxu0 0.0
      %2273 = vmatpush1.msra.mxu0 0.0
      %2274 = vmatprep.subr.mxu0 0.0
      %2275 = vmatpush1.msra.mxu0 0.0
      %2276 = vmatprep.subr.mxu0 0.0
      %2277 = vmatpush1.msra.mxu0 0.0
      %2278 = vmatprep.subr.mxu0 0.0
      %2279 = vmatpush1.msra.mxu0 0.0
      %2280 = vmatprep.subr.mxu0 0.0
      %2281 = vmatpush1.msra.mxu0 0.0
      %2282 = vmatprep.subr.mxu0 0.0
      %2283 = vmatpush1.msra.mxu0 0.0
      %2284 = vmatprep.mubr.f32.mxu0 0.0
      %2285 = vmatmul.mubr.f32.gmra.mrb[0].mxu0 %v2197
      %v2286 = vpop.f32.mrb[0].mxu0
      %v2287 = vadd.f32 0.0, %v2286
      %v2288 = vpop.f32.mrb[0].mxu0
      %2289 = vmatprep.mubr.f32.mxu0 0.0
      %2290 = vmatmul.mubr.f32.gmra.mrb[0].mxu0 %v2200
      %v2291 = vpop.f32.mrb[0].mxu0
      %v2292 = vadd.f32 0.0, %v2291
      %v2293 = vpop.f32.mrb[0].mxu0
      %2294 = vmatprep.mubr.f32.mxu0 0.0
      %2295 = vmatmul.mubr.f32.gmra.mrb[0].mxu0 %v2203
      %v2296 = vpop.f32.mrb[0].mxu0
      %v2297 = vadd.f32 0.0, %v2296
      %v2298 = vpop.f32.mrb[0].mxu0
      %2299 = vmatprep.mubr.f32.mxu0 0.0
      %2300 = vmatmul.mubr.f32.gmra.mrb[0].mxu0 %v2206
      %v2301 = vpop.f32.mrb[0].mxu0
      %v2302 = vadd.f32 0.0, %v2301
      %v2303 = vpop.f32.mrb[0].mxu0
      %2304 = vmatprep.mubr.f32.mxu0 0.0
      %2305 = vmatmul.mubr.f32.gmra.mrb[0].mxu0 %v2209
      %v2306 = vpop.f32.mrb[0].mxu0
      %v2307 = vadd.f32 0.0, %v2306
      %v2308 = vpop.f32.mrb[0].mxu0
      %2309 = vmatprep.mubr.f32.mxu0 0.0
      %2310 = vmatmul.mubr.f32.gmra.mrb[0].mxu0 %v2212
      %v2311 = vpop.f32.mrb[0].mxu0
      %v2312 = vadd.f32 0.0, %v2311
      %v2313 = vpop.f32.mrb[0].mxu0
      %2314 = vmatprep.mubr.f32.mxu0 0.0
      %2315 = vmatmul.mubr.f32.gmra.mrb[0].mxu0 %v2215
      %v2316 = vpop.f32.mrb[0].mxu0
      %v2317 = vadd.f32 0.0, %v2316
      %v2318 = vpop.f32.mrb[0].mxu0
      %2319 = vmatprep.mubr.f32.mxu0 0.0
      %2320 = vmatmul.mubr.f32.gmra.mrb[0].mxu0 %v2218
      %v2321 = vpop.f32.mrb[0].mxu0
      %v2322 = vadd.f32 0.0, %v2321
      %v2323 = vpop.f32.mrb[0].mxu0
      %2324 = vdwg.mxu0
      %v2326 = vsel %vm502, %v1848, 0
      %v2329 = vsel %vm502, %v1853, 0
      %v2332 = vsel %vm502, %v1858, 0
      %v2335 = vsel %vm502, %v1863, 0
      %v2338 = vsel %vm502, %v1868, 0
      %v2341 = vsel %vm502, %v1873, 0
      %v2344 = vsel %vm502, %v1878, 0
      %v2347 = vsel %vm502, %v1883, 0
      %2349 = vmatprep.subr.mxu0 0.0
      %2350 = vmatpush1.msra.mxu0 %v2193
      %2351 = vmatprep.subr.mxu0 0.0
      %2352 = vmatpush1.msra.mxu0 0.0
      %2353 = vmatprep.subr.mxu0 0.0
      %2354 = vmatpush1.msra.mxu0 0.0
      %2355 = vmatprep.subr.mxu0 0.0
      %2356 = vmatpush1.msra.mxu0 0.0
      %2357 = vmatprep.subr.mxu0 0.0
      %2358 = vmatpush1.msra.mxu0 0.0
      %2359 = vmatprep.subr.mxu0 0.0
      %2360 = vmatpush1.msra.mxu0 0.0
      %2361 = vmatprep.subr.mxu0 0.0
      %2362 = vmatpush1.msra.mxu0 0.0
      %2363 = vmatprep.subr.mxu0 0.0
      %2364 = vmatpush1.msra.mxu0 0.0
      %2365 = vmatprep.subr.mxu0 0.0
      %2366 = vmatpush1.msra.mxu0 0.0
      %2367 = vmatprep.subr.mxu0 0.0
      %2368 = vmatpush1.msra.mxu0 0.0
      %2369 = vmatprep.subr.mxu0 0.0
      %2370 = vmatpush1.msra.mxu0 0.0
      %2371 = vmatprep.subr.mxu0 0.0
      %2372 = vmatpush1.msra.mxu0 0.0
      %2373 = vmatprep.subr.mxu0 0.0
      %2374 = vmatpush1.msra.mxu0 0.0
      %2375 = vmatprep.subr.mxu0 0.0
      %2376 = vmatpush1.msra.mxu0 0.0
      %2377 = vmatprep.subr.mxu0 0.0
      %2378 = vmatpush1.msra.mxu0 0.0
      %2379 = vmatprep.subr.mxu0 0.0
      %2380 = vmatpush1.msra.mxu0 0.0
      %2381 = vmatprep.subr.mxu0 0.0
      %2382 = vmatpush1.msra.mxu0 0.0
      %2383 = vmatprep.subr.mxu0 0.0
      %2384 = vmatpush1.msra.mxu0 0.0
      %2385 = vmatprep.subr.mxu0 0.0
      %2386 = vmatpush1.msra.mxu0 0.0
      %2387 = vmatprep.subr.mxu0 0.0
      %2388 = vmatpush1.msra.mxu0 0.0
      %2389 = vmatprep.subr.mxu0 0.0
      %2390 = vmatpush1.msra.mxu0 0.0
      %2391 = vmatprep.subr.mxu0 0.0
      %2392 = vmatpush1.msra.mxu0 0.0
      %2393 = vmatprep.subr.mxu0 0.0
      %2394 = vmatpush1.msra.mxu0 0.0
      %2395 = vmatprep.subr.mxu0 0.0
      %2396 = vmatpush1.msra.mxu0 0.0
      %2397 = vmatprep.subr.mxu0 0.0
      %2398 = vmatpush1.msra.mxu0 0.0
      %2399 = vmatprep.subr.mxu0 0.0
      %2400 = vmatpush1.msra.mxu0 0.0
      %2401 = vmatprep.subr.mxu0 0.0
      %2402 = vmatpush1.msra.mxu0 0.0
      %2403 = vmatprep.subr.mxu0 0.0
      %2404 = vmatpush1.msra.mxu0 0.0
      %2405 = vmatprep.subr.mxu0 0.0
      %2406 = vmatpush1.msra.mxu0 0.0
      %2407 = vmatprep.subr.mxu0 0.0
      %2408 = vmatpush1.msra.mxu0 0.0
      %2409 = vmatprep.subr.mxu0 0.0
      %2410 = vmatpush1.msra.mxu0 0.0
      %2411 = vmatprep.subr.mxu0 0.0
      %2412 = vmatpush1.msra.mxu0 0.0
      %2413 = vmatprep.mubr.f32.mxu0 0.0
      %2414 = vmatmul.mubr.f32.gmra.mrb[0].mxu0 %v2326
      %v2415 = vpop.f32.mrb[0].mxu0
      %v2416 = vadd.f32 0.0, %v2415
      %v2417 = vpop.f32.mrb[0].mxu0
      %2418 = vmatprep.mubr.f32.mxu0 0.0
      %2419 = vmatmul.mubr.f32.gmra.mrb[0].mxu0 %v2329
      %v2420 = vpop.f32.mrb[0].mxu0
      %v2421 = vadd.f32 0.0, %v2420
      %v2422 = vpop.f32.mrb[0].mxu0
      %2423 = vmatprep.mubr.f32.mxu0 0.0
      %2424 = vmatmul.mubr.f32.gmra.mrb[0].mxu0 %v2332
      %v2425 = vpop.f32.mrb[0].mxu0
      %v2426 = vadd.f32 0.0, %v2425
      %v2427 = vpop.f32.mrb[0].mxu0
      %2428 = vmatprep.mubr.f32.mxu0 0.0
      %2429 = vmatmul.mubr.f32.gmra.mrb[0].mxu0 %v2335
      %v2430 = vpop.f32.mrb[0].mxu0
      %v2431 = vadd.f32 0.0, %v2430
      %v2432 = vpop.f32.mrb[0].mxu0
      %2433 = vmatprep.mubr.f32.mxu0 0.0
      %2434 = vmatmul.mubr.f32.gmra.mrb[0].mxu0 %v2338
      %v2435 = vpop.f32.mrb[0].mxu0
      %v2436 = vadd.f32 0.0, %v2435
      %v2437 = vpop.f32.mrb[0].mxu0
      %2438 = vmatprep.mubr.f32.mxu0 0.0
      %2439 = vmatmul.mubr.f32.gmra.mrb[0].mxu0 %v2341
      %v2440 = vpop.f32.mrb[0].mxu0
      %v2441 = vadd.f32 0.0, %v2440
      %v2442 = vpop.f32.mrb[0].mxu0
      %2443 = vmatprep.mubr.f32.mxu0 0.0
      %2444 = vmatmul.mubr.f32.gmra.mrb[0].mxu0 %v2344
      %v2445 = vpop.f32.mrb[0].mxu0
      %v2446 = vadd.f32 0.0, %v2445
      %v2447 = vpop.f32.mrb[0].mxu0
      %2448 = vmatprep.mubr.f32.mxu0 0.0
      %2449 = vmatmul.mubr.f32.gmra.mrb[0].mxu0 %v2347
      %v2450 = vpop.f32.mrb[0].mxu0
      %v2451 = vadd.f32 0.0, %v2450
      %v2452 = vpop.f32.mrb[0].mxu0
      %2453 = vdwg.mxu0
      %v2455 = vsel %vm502, %v2001, 0
      %v2458 = vsel %vm502, %v2006, 0
      %v2461 = vsel %vm502, %v2011, 0
      %v2464 = vsel %vm502, %v2016, 0
      %v2467 = vsel %vm502, %v2021, 0
      %v2470 = vsel %vm502, %v2026, 0
      %v2473 = vsel %vm502, %v2031, 0
      %v2476 = vsel %vm502, %v2036, 0
      %2478 = vmatprep.subr.mxu0 0.0
      %2479 = vmatpush1.msra.mxu0 %v2194
      %2480 = vmatprep.subr.mxu0 0.0
      %2481 = vmatpush1.msra.mxu0 0.0
      %2482 = vmatprep.subr.mxu0 0.0
      %2483 = vmatpush1.msra.mxu0 0.0
      %2484 = vmatprep.subr.mxu0 0.0
      %2485 = vmatpush1.msra.mxu0 0.0
      %2486 = vmatprep.subr.mxu0 0.0
      %2487 = vmatpush1.msra.mxu0 0.0
      %2488 = vmatprep.subr.mxu0 0.0
      %2489 = vmatpush1.msra.mxu0 0.0
      %2490 = vmatprep.subr.mxu0 0.0
      %2491 = vmatpush1.msra.mxu0 0.0
      %2492 = vmatprep.subr.mxu0 0.0
      %2493 = vmatpush1.msra.mxu0 0.0
      %2494 = vmatprep.subr.mxu0 0.0
      %2495 = vmatpush1.msra.mxu0 0.0
      %2496 = vmatprep.subr.mxu0 0.0
      %2497 = vmatpush1.msra.mxu0 0.0
      %2498 = vmatprep.subr.mxu0 0.0
      %2499 = vmatpush1.msra.mxu0 0.0
      %2500 = vmatprep.subr.mxu0 0.0
      %2501 = vmatpush1.msra.mxu0 0.0
      %2502 = vmatprep.subr.mxu0 0.0
      %2503 = vmatpush1.msra.mxu0 0.0
      %2504 = vmatprep.subr.mxu0 0.0
      %2505 = vmatpush1.msra.mxu0 0.0
      %2506 = vmatprep.subr.mxu0 0.0
      %2507 = vmatpush1.msra.mxu0 0.0
      %2508 = vmatprep.subr.mxu0 0.0
      %2509 = vmatpush1.msra.mxu0 0.0
      %2510 = vmatprep.subr.mxu0 0.0
      %2511 = vmatpush1.msra.mxu0 0.0
      %2512 = vmatprep.subr.mxu0 0.0
      %2513 = vmatpush1.msra.mxu0 0.0
      %2514 = vmatprep.subr.mxu0 0.0
      %2515 = vmatpush1.msra.mxu0 0.0
      %2516 = vmatprep.subr.mxu0 0.0
      %2517 = vmatpush1.msra.mxu0 0.0
      %2518 = vmatprep.subr.mxu0 0.0
      %2519 = vmatpush1.msra.mxu0 0.0
      %2520 = vmatprep.subr.mxu0 0.0
      %2521 = vmatpush1.msra.mxu0 0.0
      %2522 = vmatprep.subr.mxu0 0.0
      %2523 = vmatpush1.msra.mxu0 0.0
      %2524 = vmatprep.subr.mxu0 0.0
      %2525 = vmatpush1.msra.mxu0 0.0
      %2526 = vmatprep.subr.mxu0 0.0
      %2527 = vmatpush1.msra.mxu0 0.0
      %2528 = vmatprep.subr.mxu0 0.0
      %2529 = vmatpush1.msra.mxu0 0.0
      %2530 = vmatprep.subr.mxu0 0.0
      %2531 = vmatpush1.msra.mxu0 0.0
      %2532 = vmatprep.subr.mxu0 0.0
      %2533 = vmatpush1.msra.mxu0 0.0
      %2534 = vmatprep.subr.mxu0 0.0
      %2535 = vmatpush1.msra.mxu0 0.0
      %2536 = vmatprep.subr.mxu0 0.0
      %2537 = vmatpush1.msra.mxu0 0.0
      %2538 = vmatprep.subr.mxu0 0.0
      %2539 = vmatpush1.msra.mxu0 0.0
      %2540 = vmatprep.subr.mxu0 0.0
      %2541 = vmatpush1.msra.mxu0 0.0
      %2542 = vmatprep.mubr.f32.mxu0 0.0
      %2543 = vmatmul.mubr.f32.gmra.mrb[0].mxu0 %v2455
      %v2544 = vpop.f32.mrb[0].mxu0
      %v2545 = vadd.f32 0.0, %v2544
      %v2546 = vpop.f32.mrb[0].mxu0
      %2547 = vmatprep.mubr.f32.mxu0 0.0
      %2548 = vmatmul.mubr.f32.gmra.mrb[0].mxu0 %v2458
      %v2549 = vpop.f32.mrb[0].mxu0
      %v2550 = vadd.f32 0.0, %v2549
      %v2551 = vpop.f32.mrb[0].mxu0
      %2552 = vmatprep.mubr.f32.mxu0 0.0
      %2553 = vmatmul.mubr.f32.gmra.mrb[0].mxu0 %v2461
      %v2554 = vpop.f32.mrb[0].mxu0
      %v2555 = vadd.f32 0.0, %v2554
      %v2556 = vpop.f32.mrb[0].mxu0
      %2557 = vmatprep.mubr.f32.mxu0 0.0
      %2558 = vmatmul.mubr.f32.gmra.mrb[0].mxu0 %v2464
      %v2559 = vpop.f32.mrb[0].mxu0
      %v2560 = vadd.f32 0.0, %v2559
      %v2561 = vpop.f32.mrb[0].mxu0
      %2562 = vmatprep.mubr.f32.mxu0 0.0
      %2563 = vmatmul.mubr.f32.gmra.mrb[0].mxu0 %v2467
      %v2564 = vpop.f32.mrb[0].mxu0
      %v2565 = vadd.f32 0.0, %v2564
      %v2566 = vpop.f32.mrb[0].mxu0
      %2567 = vmatprep.mubr.f32.mxu0 0.0
      %2568 = vmatmul.mubr.f32.gmra.mrb[0].mxu0 %v2470
      %v2569 = vpop.f32.mrb[0].mxu0
      %v2570 = vadd.f32 0.0, %v2569
      %v2571 = vpop.f32.mrb[0].mxu0
      %2572 = vmatprep.mubr.f32.mxu0 0.0
      %2573 = vmatmul.mubr.f32.gmra.mrb[0].mxu0 %v2473
      %v2574 = vpop.f32.mrb[0].mxu0
      %v2575 = vadd.f32 0.0, %v2574
      %v2576 = vpop.f32.mrb[0].mxu0
      %2577 = vmatprep.mubr.f32.mxu0 0.0
      %2578 = vmatmul.mubr.f32.gmra.mrb[0].mxu0 %v2476
      %v2579 = vpop.f32.mrb[0].mxu0
      %v2580 = vadd.f32 0.0, %v2579
      %v2581 = vpop.f32.mrb[0].mxu0
      %2582 = vdwg.mxu0
      %v2584 = vsel %vm502, %v2154, 0
      %v2587 = vsel %vm502, %v2159, 0
      %v2590 = vsel %vm502, %v2164, 0
      %v2593 = vsel %vm502, %v2169, 0
      %v2596 = vsel %vm502, %v2174, 0
      %v2599 = vsel %vm502, %v2179, 0
      %v2602 = vsel %vm502, %v2184, 0
      %v2605 = vsel %vm502, %v2189, 0
      %2607 = vmatprep.subr.mxu0 0.0
      %2608 = vmatpush1.msra.mxu0 %v2195
      %2609 = vmatprep.subr.mxu0 0.0
      %2610 = vmatpush1.msra.mxu0 0.0
      %2611 = vmatprep.subr.mxu0 0.0
      %2612 = vmatpush1.msra.mxu0 0.0
      %2613 = vmatprep.subr.mxu0 0.0
      %2614 = vmatpush1.msra.mxu0 0.0
      %2615 = vmatprep.subr.mxu0 0.0
      %2616 = vmatpush1.msra.mxu0 0.0
      %2617 = vmatprep.subr.mxu0 0.0
      %2618 = vmatpush1.msra.mxu0 0.0
      %2619 = vmatprep.subr.mxu0 0.0
      %2620 = vmatpush1.msra.mxu0 0.0
      %2621 = vmatprep.subr.mxu0 0.0
      %2622 = vmatpush1.msra.mxu0 0.0
      %2623 = vmatprep.subr.mxu0 0.0
      %2624 = vmatpush1.msra.mxu0 0.0
      %2625 = vmatprep.subr.mxu0 0.0
      %2626 = vmatpush1.msra.mxu0 0.0
      %2627 = vmatprep.subr.mxu0 0.0
      %2628 = vmatpush1.msra.mxu0 0.0
      %2629 = vmatprep.subr.mxu0 0.0
      %2630 = vmatpush1.msra.mxu0 0.0
      %2631 = vmatprep.subr.mxu0 0.0
      %2632 = vmatpush1.msra.mxu0 0.0
      %2633 = vmatprep.subr.mxu0 0.0
      %2634 = vmatpush1.msra.mxu0 0.0
      %2635 = vmatprep.subr.mxu0 0.0
      %2636 = vmatpush1.msra.mxu0 0.0
      %2637 = vmatprep.subr.mxu0 0.0
      %2638 = vmatpush1.msra.mxu0 0.0
      %2639 = vmatprep.subr.mxu0 0.0
      %2640 = vmatpush1.msra.mxu0 0.0
      %2641 = vmatprep.subr.mxu0 0.0
      %2642 = vmatpush1.msra.mxu0 0.0
      %2643 = vmatprep.subr.mxu0 0.0
      %2644 = vmatpush1.msra.mxu0 0.0
      %2645 = vmatprep.subr.mxu0 0.0
      %2646 = vmatpush1.msra.mxu0 0.0
      %2647 = vmatprep.subr.mxu0 0.0
      %2648 = vmatpush1.msra.mxu0 0.0
      %2649 = vmatprep.subr.mxu0 0.0
      %2650 = vmatpush1.msra.mxu0 0.0
      %2651 = vmatprep.subr.mxu0 0.0
      %2652 = vmatpush1.msra.mxu0 0.0
      %2653 = vmatprep.subr.mxu0 0.0
      %2654 = vmatpush1.msra.mxu0 0.0
      %2655 = vmatprep.subr.mxu0 0.0
      %2656 = vmatpush1.msra.mxu0 0.0
      %2657 = vmatprep.subr.mxu0 0.0
      %2658 = vmatpush1.msra.mxu0 0.0
      %2659 = vmatprep.subr.mxu0 0.0
      %2660 = vmatpush1.msra.mxu0 0.0
      %2661 = vmatprep.subr.mxu0 0.0
      %2662 = vmatpush1.msra.mxu0 0.0
      %2663 = vmatprep.subr.mxu0 0.0
      %2664 = vmatpush1.msra.mxu0 0.0
      %2665 = vmatprep.subr.mxu0 0.0
      %2666 = vmatpush1.msra.mxu0 0.0
      %2667 = vmatprep.subr.mxu0 0.0
      %2668 = vmatpush1.msra.mxu0 0.0
      %2669 = vmatprep.subr.mxu0 0.0
      %2670 = vmatpush1.msra.mxu0 0.0
      %2671 = vmatprep.mubr.f32.mxu0 0.0
      %2672 = vmatmul.mubr.f32.gmra.mrb[0].mxu0 %v2584
      %v2673 = vpop.f32.mrb[0].mxu0
      %v2674 = vadd.f32 0.0, %v2673
      %v2675 = vpop.f32.mrb[0].mxu0
      %2676 = vmatprep.mubr.f32.mxu0 0.0
      %2677 = vmatmul.mubr.f32.gmra.mrb[0].mxu0 %v2587
      %v2678 = vpop.f32.mrb[0].mxu0
      %v2679 = vadd.f32 0.0, %v2678
      %v2680 = vpop.f32.mrb[0].mxu0
      %2681 = vmatprep.mubr.f32.mxu0 0.0
      %2682 = vmatmul.mubr.f32.gmra.mrb[0].mxu0 %v2590
      %v2683 = vpop.f32.mrb[0].mxu0
      %v2684 = vadd.f32 0.0, %v2683
      %v2685 = vpop.f32.mrb[0].mxu0
      %2686 = vmatprep.mubr.f32.mxu0 0.0
      %2687 = vmatmul.mubr.f32.gmra.mrb[0].mxu0 %v2593
      %v2688 = vpop.f32.mrb[0].mxu0
      %v2689 = vadd.f32 0.0, %v2688
      %v2690 = vpop.f32.mrb[0].mxu0
      %2691 = vmatprep.mubr.f32.mxu0 0.0
      %2692 = vmatmul.mubr.f32.gmra.mrb[0].mxu0 %v2596
      %v2693 = vpop.f32.mrb[0].mxu0
      %v2694 = vadd.f32 0.0, %v2693
      %v2695 = vpop.f32.mrb[0].mxu0
      %2696 = vmatprep.mubr.f32.mxu0 0.0
      %2697 = vmatmul.mubr.f32.gmra.mrb[0].mxu0 %v2599
      %v2698 = vpop.f32.mrb[0].mxu0
      %v2699 = vadd.f32 0.0, %v2698
      %v2700 = vpop.f32.mrb[0].mxu0
      %2701 = vmatprep.mubr.f32.mxu0 0.0
      %2702 = vmatmul.mubr.f32.gmra.mrb[0].mxu0 %v2602
      %v2703 = vpop.f32.mrb[0].mxu0
      %v2704 = vadd.f32 0.0, %v2703
      %v2705 = vpop.f32.mrb[0].mxu0
      %2706 = vmatprep.mubr.f32.mxu0 0.0
      %2707 = vmatmul.mubr.f32.gmra.mrb[0].mxu0 %v2605
      %v2708 = vpop.f32.mrb[0].mxu0
      %v2709 = vadd.f32 0.0, %v2708
      %v2710 = vpop.f32.mrb[0].mxu0
      %2711 = vdwg.mxu0
      %v2712 = vsel %vm244, %v2287, 0.0
      %v2713 = vsel %vm244, %v2416, 0.0
      %v2714 = vadd.f32 %v2712, %v2713
      %v2715 = vsel %vm244, %v2545, 0.0
      %v2716 = vadd.f32 %v2714, %v2715
      %v2717 = vsel %vm244, %v2674, 0.0
      %v2718 = vadd.f32 %v2716, %v2717
      %v2719 = vsel %vm244, %v2292, 0.0
      %v2720 = vsel %vm244, %v2421, 0.0
      %v2721 = vadd.f32 %v2719, %v2720
      %v2722 = vsel %vm244, %v2550, 0.0
      %v2723 = vadd.f32 %v2721, %v2722
      %v2724 = vsel %vm244, %v2679, 0.0
      %v2725 = vadd.f32 %v2723, %v2724
      %v2726 = vsel %vm244, %v2297, 0.0
      %v2727 = vsel %vm244, %v2426, 0.0
      %v2728 = vadd.f32 %v2726, %v2727
      %v2729 = vsel %vm244, %v2555, 0.0
      %v2730 = vadd.f32 %v2728, %v2729
      %v2731 = vsel %vm244, %v2684, 0.0
      %v2732 = vadd.f32 %v2730, %v2731
      %v2733 = vsel %vm244, %v2302, 0.0
      %v2734 = vsel %vm244, %v2431, 0.0
      %v2735 = vadd.f32 %v2733, %v2734
      %v2736 = vsel %vm244, %v2560, 0.0
      %v2737 = vadd.f32 %v2735, %v2736
      %v2738 = vsel %vm244, %v2689, 0.0
      %v2739 = vadd.f32 %v2737, %v2738
      %v2740 = vsel %vm244, %v2307, 0.0
      %v2741 = vsel %vm244, %v2436, 0.0
      %v2742 = vadd.f32 %v2740, %v2741
      %v2743 = vsel %vm244, %v2565, 0.0
      %v2744 = vadd.f32 %v2742, %v2743
      %v2745 = vsel %vm244, %v2694, 0.0
      %v2746 = vadd.f32 %v2744, %v2745
      %v2747 = vsel %vm244, %v2312, 0.0
      %v2748 = vsel %vm244, %v2441, 0.0
      %v2749 = vadd.f32 %v2747, %v2748
      %v2750 = vsel %vm244, %v2570, 0.0
      %v2751 = vadd.f32 %v2749, %v2750
      %v2752 = vsel %vm244, %v2699, 0.0
      %v2753 = vadd.f32 %v2751, %v2752
      %v2754 = vsel %vm244, %v2317, 0.0
      %v2755 = vsel %vm244, %v2446, 0.0
      %v2756 = vadd.f32 %v2754, %v2755
      %v2757 = vsel %vm244, %v2575, 0.0
      %v2758 = vadd.f32 %v2756, %v2757
      %v2759 = vsel %vm244, %v2704, 0.0
      %v2760 = vadd.f32 %v2758, %v2759
      %v2761 = vsel %vm244, %v2322, 0.0
      %v2762 = vsel %vm244, %v2451, 0.0
      %v2763 = vadd.f32 %v2761, %v2762
      %v2764 = vsel %vm244, %v2580, 0.0
      %v2765 = vadd.f32 %v2763, %v2764
      %v2766 = vsel %vm244, %v2709, 0.0
      %v2767 = vadd.f32 %v2765, %v2766
      %v2768 = vld [vmem:[%s4] sm:$0x1]
      %v2770 = vlaneseq
      %v2771 = vshrl.u32 %v2770, 7
      %v2772 = vsub.s32 0, %v2771
      %v2773 = vrot.slane %v2768, %v2772
      %v2775 = vadd.f32 %v2718, %v2773
      %v2776 = vadd.f32 %v2725, %v2773
      %v2777 = vadd.f32 %v2732, %v2773
      %v2778 = vadd.f32 %v2739, %v2773
      %v2779 = vadd.f32 %v2746, %v2773
      %v2780 = vadd.f32 %v2753, %v2773
      %v2781 = vadd.f32 %v2760, %v2773
      %v2782 = vadd.f32 %v2767, %v2773
      %v2783 = vadd.f32 %v225, %v2775
      %v2784 = vadd.f32 %v226, %v2776
      %v2785 = vadd.f32 %v227, %v2777
      %v2786 = vadd.f32 %v228, %v2778
      %v2787 = vadd.f32 %v229, %v2779
      %v2788 = vadd.f32 %v230, %v2780
      %v2789 = vadd.f32 %v231, %v2781
      %v2790 = vadd.f32 %v232, %v2782
      %2791 = vst.msk [vmem:[%s224] sm:$0xff] %vm244, %v2783
      %2792 = vst.msk [vmem:[%s224 + $0x8] sm:$0xff] %vm244, %v2784
      %2793 = vst.msk [vmem:[%s224 + $0x10] sm:$0xff] %vm244, %v2785
      %2794 = vst.msk [vmem:[%s224 + $0x18] sm:$0xff] %vm244, %v2786
      %2795 = vst.msk [vmem:[%s224 + $0x20] sm:$0xff] %vm244, %v2787
      %2796 = vst.msk [vmem:[%s224 + $0x28] sm:$0xff] %vm244, %v2788
      %2797 = vst.msk [vmem:[%s224 + $0x30] sm:$0xff] %vm244, %v2789
      %2798 = vst.msk [vmem:[%s224 + $0x38] sm:$0xff] %vm244, %v2790
      %p2799 = scmp.lt.s32.totalorder %s16, 1
      %s2800 = scalar_select %p2799, %s16, 1
      %s2801 = smul.addr %s2800, 8
      %s2802 = smul.addr %s2801, 8
      %s2803 = scalar_lea.vmem %s5, %s2802
      // Predicated region
      $region41: #{tpu_custom_call.1} parent=39 // pred_check
        %p2804 = pneg %p144
      $region42: #{tpu_custom_call.1} parent=39 // pred_check_branch
        %2806 = sbr.rel (%p2804) target = $region44
      $region43: #{tpu_custom_call.1} parent=39 // pred_region
        _
      $region44: #{tpu_custom_call.1} parent=39 // pred_fallthru
        _
    $region40: #{tpu_custom_call.1} parent=5 // pred_fallthru
      _
    %p2807 = scmp.le.s32.totalorder 2, %s11
    // Predicated region
    $region45: #{tpu_custom_call.1} parent=5 // pred_check
      %p2808 = pneg %p2807
    $region46: #{tpu_custom_call.1} parent=5 // pred_check_branch
      %2810 = sbr.rel (%p2808) target = $region48
    $region47: #{tpu_custom_call.1} parent=5 // pred_region
      %s2811 = ssub.s32 %s11, 2
      // Predicated region
      $region49: #{tpu_custom_call.1} parent=47 // pred_check
        %p2812 = pneg %p150
      $region50: #{tpu_custom_call.1} parent=47 // pred_check_branch
        %2814 = sbr.rel (%p2812) target = $region52
      $region51: #{tpu_custom_call.1} parent=47 // pred_region
        %p2815 = scmp.lt.s32.totalorder %s17, 1
        %s2816 = scalar_select %p2815, %s17, 1
        %s2817 = smul.addr %s2816, 8
        %s2818 = smul.addr %s2817, 8
        %s2819 = scalar_lea.vmem %s5, %s2818
      $region52: #{tpu_custom_call.1} parent=47 // pred_fallthru
        _
    $region48: #{tpu_custom_call.1} parent=5 // pred_fallthru
      _
  $region6: #{tpu_custom_call.1} parent=0 // loop_footer
    %s15 = sadd.s32 1, %s11
  $region7: #{tpu_custom_call.1} parent=0 // loop_footer_branch
    %10 = sbr.rel target = $region3
  $region8: #{tpu_custom_call.1} parent=0 // loop_exit
    _

</llo_original>
